<compile_context>
chip_gen: v5e
topology: v5e:2x2
jax: 0.10.0
libtpu: 0.0.40
codegen_flags: <defaults>
</compile_context>

<pallas_src>
import jax
import jax.numpy as jnp
from jax.experimental import pallas as pl
from jax.experimental.pallas import tpu as pltpu

NEG_SLOPE = 0.2   # nn.LeakyReLU(negative_slope=0.2)
EPS = 1e-5
LANE = 128
# args.basic.edge_feature assumed True (full GenMessage path);
# args.basic.nb_mlp_layer = 2 -> MLP_A is two edge_dim->edge_dim layers.


def _leaky_relu(x):
    return jnp.where(x >= 0.0, x, NEG_SLOPE * x)


def _round_up(x, m):
    return ((x + m - 1) // m) * m


def _pad2(x, rows, cols):
    return jnp.pad(x, ((0, rows - x.shape[0]), (0, cols - x.shape[1])))


def _v_std_kernel(
    v_ref, e_ref, gat_ref, agg_ref, invdeg_ref,
    ap_w_ref, ap_b_ref, bp_w_ref, bp_b_ref,
    m0_w_ref, m0_b_ref, m1_w_ref, m1_b_ref,
    bc_w_ref, bc_b_ref,
    out_ref,
    vp_scratch, acc_scratch,
):
    f32 = jnp.float32
    k = pl.program_id(1)              # edge-tile (reduction) axis, innermost
    dnp = out_ref.shape[-1]           # padded node_dim (multiple of 128)

    # ---- node path (LeakyReLU -> NodePooling); computed once per node tile ----
    @pl.when(k == 0)
    def _init():
        v = _leaky_relu(v_ref[...].astype(f32))
        h = jnp.dot(v, ap_w_ref[...], preferred_element_type=f32) + ap_b_ref[...]
        vp_scratch[...] = (
            jnp.dot(_leaky_relu(h), bp_w_ref[...], preferred_element_type=f32)
            + bp_b_ref[...])
        acc_scratch[...] = jnp.zeros_like(acc_scratch)

    # ---- edge path for this edge tile: MLP_A, then fused (B|C) scale/shift ----
    # TODO(synk): MLP class body not given in the spec; assumed Linear+ReLU
    # hidden layer followed by a linear layer (edge_dim -> edge_dim).
    x = e_ref[...].astype(f32)
    x = jnp.maximum(
        jnp.dot(x, m0_w_ref[...], preferred_element_type=f32) + m0_b_ref[...], 0.0)
    x = jnp.dot(x, m1_w_ref[...], preferred_element_type=f32) + m1_b_ref[...]
    ss = jnp.dot(x, bc_w_ref[...], preferred_element_type=f32) + bc_b_ref[...]
    scale = jax.nn.sigmoid(ss[:, :dnp])
    shift = ss[:, dnp:]

    # gather Vp[src] for this edge tile via 0/1 one-hot matmul (bf16 operand,
    # cast in-register; products are exact since entries are 0/1)
    vs = jnp.dot(gat_ref[...].astype(f32), vp_scratch[...],
                 preferred_element_type=f32)                     # [TE, Dnp]
    m1 = scale * vs + shift
    diff = m1 * (m1 - 1.0)                                       # M2 - M1 (fused)

    # single aggregation matmul: sum_{e: dst in this node tile} diff[e]
    acc_scratch[...] += jnp.dot(agg_ref[...].astype(f32), diff,
                                preferred_element_type=f32)      # [TN, Dnp]

    # ---- epilogue: divide by degree (f32), relu, sqrt ----
    @pl.when(k == pl.num_programs(1) - 1)
    def _finalize():
        mean_diff = acc_scratch[...] * invdeg_ref[...]
        out_ref[...] = jnp.sqrt(jnp.maximum(mean_diff, 0.0) + EPS).astype(out_ref.dtype)


def v_std_forward(params, V, E, src, dst, *, tn=64, te=128):
    """Pallas implementation of V_Std.forward((G, V, E)).

    The DGL graph G is represented by int32 edge-endpoint arrays (src, dst).
    """
    N, Dn = V.shape
    Ne, De = E.shape

    # Lane-dense / tile-aligned padding (padded lanes stay inert: weights are
    # zero-padded, padded edges map to no node, padded nodes have degree 0).
    Dnp = _round_up(Dn, LANE)
    Dep = _round_up(De, LANE)
    Np = _round_up(N, tn)
    Nep = _round_up(Ne, te)

    Vp = _pad2(V.astype(jnp.float32), Np, Dnp)
    Ep = _pad2(E.astype(jnp.float32), Nep, Dep)

    # Index-only graph preprocessing (no transposes; 0/1 matrices in bf16).
    src_p = jnp.full((Nep,), Np, jnp.int32).at[:Ne].set(src.astype(jnp.int32))
    dst_p = jnp.full((Nep,), Np, jnp.int32).at[:Ne].set(dst.astype(jnp.int32))
    node_ids = jnp.arange(Np, dtype=jnp.int32)
    gat = (src_p[:, None] == node_ids[None, :]).astype(jnp.bfloat16)   # [Nep, Np]
    agg = (node_ids[:, None] == dst_p[None, :]).astype(jnp.bfloat16)   # [Np, Nep]
    deg = agg.astype(jnp.float32).sum(axis=1)                          # [Np]
    inv_deg = jnp.where(deg > 0.0, 1.0 / jnp.maximum(deg, 1.0), 0.0)[:, None]

    # Zero-padded weights (B and C of GenMessage fused into one matmul).
    ap_w = _pad2(params["ap_w"], Dnp, Dnp); ap_b = _pad2(params["ap_b"], 1, Dnp)
    bp_w = _pad2(params["bp_w"], Dnp, Dnp); bp_b = _pad2(params["bp_b"], 1, Dnp)
    m0_w = _pad2(params["m0_w"], Dep, Dep); m0_b = _pad2(params["m0_b"], 1, Dep)
    m1_w = _pad2(params["m1_w"], Dep, Dep); m1_b = _pad2(params["m1_b"], 1, Dep)
    bc_w = jnp.concatenate([_pad2(params["bg_w"], Dep, Dnp),
                            _pad2(params["cg_w"], Dep, Dnp)], axis=1)  # [Dep, 2*Dnp]
    bc_b = jnp.concatenate([_pad2(params["bg_b"], 1, Dnp),
                            _pad2(params["cg_b"], 1, Dnp)], axis=1)

    grid = (Np // tn, Nep // te)

    def const(shape):   # weight / resident operand: same block every step
        return pl.BlockSpec(shape, lambda i, k: (0, 0))

    out_padded = pl.pallas_call(
        _v_std_kernel,
        out_shape=jax.ShapeDtypeStruct((Np, Dnp), V.dtype),
        grid_spec=pltpu.PrefetchScalarGridSpec(
            num_scalar_prefetch=0,
            grid=grid,
            in_specs=[
                const((Np, Dnp)),                                  # V (resident)
                pl.BlockSpec((te, Dep), lambda i, k: (k, 0)),      # E edge tile
                pl.BlockSpec((te, Np), lambda i, k: (k, 0)),       # src one-hot tile
                pl.BlockSpec((tn, te), lambda i, k: (i, k)),       # dst incidence tile
                pl.BlockSpec((tn, 1), lambda i, k: (i, 0)),        # 1/deg (f32)
                const((Dnp, Dnp)), const((1, Dnp)),                # NodePooling.A
                const((Dnp, Dnp)), const((1, Dnp)),                # NodePooling.B
                const((Dep, Dep)), const((1, Dep)),                # MLP_A layer 0
                const((Dep, Dep)), const((1, Dep)),                # MLP_A layer 1
                const((Dep, 2 * Dnp)), const((1, 2 * Dnp)),        # GenMessage B|C fused
            ],
            out_specs=pl.BlockSpec((tn, Dnp), lambda i, k: (i, 0)),
            scratch_shapes=[
                pltpu.VMEM((Np, Dnp), jnp.float32),   # pooled node feats Vp
                pltpu.VMEM((tn, Dnp), jnp.float32),   # sum(M2 - M1) accumulator
            ],
        ),
        compiler_params=pltpu.CompilerParams(
            dimension_semantics=("parallel", "arbitrary"),
            vmem_limit_bytes=32 * 1024 * 1024,
        ),
    )(Vp, Ep, gat, agg, inv_deg,
      ap_w, ap_b, bp_w, bp_b, m0_w, m0_b, m1_w, m1_b, bc_w, bc_b)

    return out_padded[:N, :Dn]


def _init_params(key, node_dim, edge_dim):
    def linear(k, din, dout):
        kw, kb = jax.random.split(k)
        w = jax.random.normal(kw, (din, dout), jnp.float32) / jnp.sqrt(float(din))
        b = 0.1 * jax.random.normal(kb, (1, dout), jnp.float32)
        return w, b

    keys = jax.random.split(key, 6)
    ap_w, ap_b = linear(keys[0], node_dim, node_dim)   # NodePooling.A
    bp_w, bp_b = linear(keys[1], node_dim, node_dim)   # NodePooling.B
    m0_w, m0_b = linear(keys[2], edge_dim, edge_dim)   # GenMessage.A (MLP layer 0)
    m1_w, m1_b = linear(keys[3], edge_dim, edge_dim)   # GenMessage.A (MLP layer 1)
    bg_w, bg_b = linear(keys[4], edge_dim, node_dim)   # GenMessage.B
    cg_w, cg_b = linear(keys[5], edge_dim, node_dim)   # GenMessage.C
    return dict(ap_w=ap_w, ap_b=ap_b, bp_w=bp_w, bp_b=bp_b,
                m0_w=m0_w, m0_b=m0_b, m1_w=m1_w, m1_b=m1_b,
                bg_w=bg_w, bg_b=bg_b, cg_w=cg_w, cg_b=cg_b)


def _ref_forward(params, V, E, src, dst):
    """Pure-JAX reference of V_Std.forward (for correctness checking)."""
    N = V.shape[0]
    v = _leaky_relu(V)
    h = _leaky_relu(v @ params["ap_w"] + params["ap_b"])
    vp = h @ params["bp_w"] + params["bp_b"]

    x = jnp.maximum(E @ params["m0_w"] + params["m0_b"], 0.0)
    x = x @ params["m1_w"] + params["m1_b"]
    scale = jax.nn.sigmoid(x @ params["bg_w"] + params["bg_b"])
    shift = x @ params["cg_w"] + params["cg_b"]

    m1 = scale * vp[src] + shift
    m2 = m1 * m1

    deg = jax.ops.segment_sum(jnp.ones_like(dst, jnp.float32), dst, N)
    denom = jnp.maximum(deg, 1.0)[:, None]
    v1 = jax.ops.segment_sum(m1, dst, N) / denom
    v2 = jax.ops.segment_sum(m2, dst, N) / denom
    return jnp.sqrt(jnp.maximum(v2 - v1, 0.0) + EPS)


if __name__ == "__main__":
    key = jax.random.PRNGKey(0)
    k_v, k_e, k_src, k_dst, k_par = jax.random.split(key, 5)

    num_nodes, node_dim, edge_dim, num_edges = 128, 64, 32, 512

    V = jax.random.normal(k_v, (num_nodes, node_dim), jnp.float32)
    E = jax.random.normal(k_e, (num_edges, edge_dim), jnp.float32)
    src = jax.random.randint(k_src, (num_edges,), 0, num_nodes, jnp.int32)
    dst = jax.random.randint(k_dst, (num_edges,), 0, num_nodes, jnp.int32)

    params = _init_params(k_par, node_dim, edge_dim)

    out = v_std_forward(params, V, E, src, dst)
    out = jax.block_until_ready(out)

    ref = _ref_forward(params, V, E, src, dst)

    assert out.shape == (num_nodes, node_dim) and out.dtype == V.dtype
    assert bool(jnp.all(jnp.isfinite(out)))
    max_err = float(jnp.max(jnp.abs(out - ref)))
    assert jnp.allclose(out, ref, rtol=1e-3, atol=1e-3), f"max_err={max_err}"

    print("KERNEL_OK")
</pallas_src>

<mosaic_0001>
module attributes {stable_mosaic.version = 11 : i64} {
  func.func @_v_std_kernel(%arg0: i32, %arg1: i32, %arg2: memref<128x128xf32, #tpu.memory_space<vmem>>, %arg3: memref<128x128xf32, #tpu.memory_space<vmem>>, %arg4: memref<128x128xbf16, #tpu.memory_space<vmem>>, %arg5: memref<64x128xbf16, #tpu.memory_space<vmem>>, %arg6: memref<64x1xf32, #tpu.memory_space<vmem>>, %arg7: memref<128x128xf32, #tpu.memory_space<vmem>>, %arg8: memref<1x128xf32, #tpu.memory_space<vmem>>, %arg9: memref<128x128xf32, #tpu.memory_space<vmem>>, %arg10: memref<1x128xf32, #tpu.memory_space<vmem>>, %arg11: memref<128x128xf32, #tpu.memory_space<vmem>>, %arg12: memref<1x128xf32, #tpu.memory_space<vmem>>, %arg13: memref<128x128xf32, #tpu.memory_space<vmem>>, %arg14: memref<1x128xf32, #tpu.memory_space<vmem>>, %arg15: memref<128x256xf32, #tpu.memory_space<vmem>>, %arg16: memref<1x256xf32, #tpu.memory_space<vmem>>, %arg17: memref<64x128xf32, #tpu.memory_space<vmem>>, %arg18: memref<128x128xf32, #tpu.memory_space<vmem>>, %arg19: memref<64x128xf32, #tpu.memory_space<vmem>>) attributes {dimension_semantics = [#tpu.dimension_semantics<parallel>, #tpu.dimension_semantics<arbitrary>], iteration_bounds = array<i64: 2, 4>, scalar_prefetch = 0 : i64, scratch_operands = 2 : i64, tpu.core_type = #tpu.core_type<tc>, window_params = [{pipeline_mode = #tpu.pipeline_mode<synchronous>, transform_indices = @transform_0, window_bounds = array<i64: 128, 128>}, {transform_indices = @transform_1, window_bounds = array<i64: 128, 128>}, {transform_indices = @transform_2, window_bounds = array<i64: 128, 128>}, {transform_indices = @transform_3, window_bounds = array<i64: 64, 128>}, {transform_indices = @transform_4, window_bounds = array<i64: 64, 1>}, {pipeline_mode = #tpu.pipeline_mode<synchronous>, transform_indices = @transform_5, window_bounds = array<i64: 128, 128>}, {pipeline_mode = #tpu.pipeline_mode<synchronous>, transform_indices = @transform_6, window_bounds = array<i64: 1, 128>}, {pipeline_mode = #tpu.pipeline_mode<synchronous>, transform_indices = @transform_7, window_bounds = array<i64: 128, 128>}, {pipeline_mode = #tpu.pipeline_mode<synchronous>, transform_indices = @transform_8, window_bounds = array<i64: 1, 128>}, {pipeline_mode = #tpu.pipeline_mode<synchronous>, transform_indices = @transform_9, window_bounds = array<i64: 128, 128>}, {pipeline_mode = #tpu.pipeline_mode<synchronous>, transform_indices = @transform_10, window_bounds = array<i64: 1, 128>}, {pipeline_mode = #tpu.pipeline_mode<synchronous>, transform_indices = @transform_11, window_bounds = array<i64: 128, 128>}, {pipeline_mode = #tpu.pipeline_mode<synchronous>, transform_indices = @transform_12, window_bounds = array<i64: 1, 128>}, {pipeline_mode = #tpu.pipeline_mode<synchronous>, transform_indices = @transform_13, window_bounds = array<i64: 128, 256>}, {pipeline_mode = #tpu.pipeline_mode<synchronous>, transform_indices = @transform_14, window_bounds = array<i64: 1, 256>}, {transform_indices = @transform_15, window_bounds = array<i64: 64, 128>}]} {
    %c0_i32 = arith.constant 0 : i32
    %0 = arith.cmpi eq, %arg1, %c0_i32 : i32
    %1 = arith.extui %0 : i1 to i32
    %c0_i32_0 = arith.constant 0 : i32
    %2 = arith.cmpi ne, %1, %c0_i32_0 : i32
    scf.if %2 {
      %c0_32 = arith.constant 0 : index
      %c0_33 = arith.constant 0 : index
      %46 = vector.load %arg2[%c0_32, %c0_33] : memref<128x128xf32, #tpu.memory_space<vmem>>, vector<128x128xf32>
      %cst_34 = arith.constant 0.000000e+00 : f32
      %47 = vector.broadcast %cst_34 : f32 to vector<128x128xf32>
      %48 = arith.cmpf oge, %46, %47 : vector<128x128xf32>
      %cst_35 = arith.constant 2.000000e-01 : f32
      %49 = vector.broadcast %cst_35 : f32 to vector<128x128xf32>
      %50 = arith.mulf %49, %46 : vector<128x128xf32>
      %51 = arith.select %48, %46, %50 : vector<128x128xi1>, vector<128x128xf32>
      %c0_36 = arith.constant 0 : index
      %c0_37 = arith.constant 0 : index
      %52 = vector.load %arg7[%c0_36, %c0_37] : memref<128x128xf32, #tpu.memory_space<vmem>>, vector<128x128xf32>
      %cst_38 = arith.constant dense<0.000000e+00> : vector<128x128xf32>
      %53 = tpu.matmul %51, %52, %cst_38 {dimension_numbers = #tpu.dot_dimension_numbers<[1], [0], [0], [1], [0, 0, 1, 1], [], []>} : vector<128x128xf32>, vector<128x128xf32>, vector<128x128xf32> -> vector<128x128xf32>
      %c0_39 = arith.constant 0 : index
      %c0_40 = arith.constant 0 : index
      %54 = vector.load %arg8[%c0_39, %c0_40] : memref<1x128xf32, #tpu.memory_space<vmem>>, vector<1x128xf32>
      %55 = vector.broadcast %54 : vector<1x128xf32> to vector<128x128xf32>
      %56 = arith.addf %53, %55 : vector<128x128xf32>
      %cst_41 = arith.constant 0.000000e+00 : f32
      %57 = vector.broadcast %cst_41 : f32 to vector<128x128xf32>
      %58 = arith.cmpf oge, %56, %57 : vector<128x128xf32>
      %cst_42 = arith.constant 2.000000e-01 : f32
      %59 = vector.broadcast %cst_42 : f32 to vector<128x128xf32>
      %60 = arith.mulf %59, %56 : vector<128x128xf32>
      %61 = arith.select %58, %56, %60 : vector<128x128xi1>, vector<128x128xf32>
      %c0_43 = arith.constant 0 : index
      %c0_44 = arith.constant 0 : index
      %62 = vector.load %arg9[%c0_43, %c0_44] : memref<128x128xf32, #tpu.memory_space<vmem>>, vector<128x128xf32>
      %cst_45 = arith.constant dense<0.000000e+00> : vector<128x128xf32>
      %63 = tpu.matmul %61, %62, %cst_45 {dimension_numbers = #tpu.dot_dimension_numbers<[1], [0], [0], [1], [0, 0, 1, 1], [], []>} : vector<128x128xf32>, vector<128x128xf32>, vector<128x128xf32> -> vector<128x128xf32>
      %c0_46 = arith.constant 0 : index
      %c0_47 = arith.constant 0 : index
      %64 = vector.load %arg10[%c0_46, %c0_47] : memref<1x128xf32, #tpu.memory_space<vmem>>, vector<1x128xf32>
      %65 = vector.broadcast %64 : vector<1x128xf32> to vector<128x128xf32>
      %66 = arith.addf %63, %65 : vector<128x128xf32>
      %c0_48 = arith.constant 0 : index
      %c0_49 = arith.constant 0 : index
      %67 = vector.load %arg18[%c0_48, %c0_49] : memref<128x128xf32, #tpu.memory_space<vmem>>, vector<128x128xf32>
      tpu.vector_store %arg18[%c0_48, %c0_49], %66 {strides = array<i32>} : memref<128x128xf32, #tpu.memory_space<vmem>>, vector<128x128xf32>,
      %cst_50 = arith.constant 0.000000e+00 : f32
      %68 = vector.broadcast %cst_50 : f32 to vector<64x128xf32>
      %c0_51 = arith.constant 0 : index
      %c0_52 = arith.constant 0 : index
      %69 = vector.load %arg19[%c0_51, %c0_52] : memref<64x128xf32, #tpu.memory_space<vmem>>, vector<64x128xf32>
      tpu.vector_store %arg19[%c0_51, %c0_52], %68 {strides = array<i32>} : memref<64x128xf32, #tpu.memory_space<vmem>>, vector<64x128xf32>,
    } else {
    }
    %c0 = arith.constant 0 : index
    %c0_1 = arith.constant 0 : index
    %3 = vector.load %arg3[%c0, %c0_1] : memref<128x128xf32, #tpu.memory_space<vmem>>, vector<128x128xf32>
    %c0_2 = arith.constant 0 : index
    %c0_3 = arith.constant 0 : index
    %4 = vector.load %arg11[%c0_2, %c0_3] : memref<128x128xf32, #tpu.memory_space<vmem>>, vector<128x128xf32>
    %cst = arith.constant dense<0.000000e+00> : vector<128x128xf32>
    %5 = tpu.matmul %3, %4, %cst {dimension_numbers = #tpu.dot_dimension_numbers<[1], [0], [0], [1], [0, 0, 1, 1], [], []>} : vector<128x128xf32>, vector<128x128xf32>, vector<128x128xf32> -> vector<128x128xf32>
    %c0_4 = arith.constant 0 : index
    %c0_5 = arith.constant 0 : index
    %6 = vector.load %arg12[%c0_4, %c0_5] : memref<1x128xf32, #tpu.memory_space<vmem>>, vector<1x128xf32>
    %7 = vector.broadcast %6 : vector<1x128xf32> to vector<128x128xf32>
    %8 = arith.addf %5, %7 : vector<128x128xf32>
    %cst_6 = arith.constant 0.000000e+00 : f32
    %9 = vector.broadcast %cst_6 : f32 to vector<128x128xf32>
    %10 = arith.maximumf %8, %9 : vector<128x128xf32>
    %c0_7 = arith.constant 0 : index
    %c0_8 = arith.constant 0 : index
    %11 = vector.load %arg13[%c0_7, %c0_8] : memref<128x128xf32, #tpu.memory_space<vmem>>, vector<128x128xf32>
    %cst_9 = arith.constant dense<0.000000e+00> : vector<128x128xf32>
    %12 = tpu.matmul %10, %11, %cst_9 {dimension_numbers = #tpu.dot_dimension_numbers<[1], [0], [0], [1], [0, 0, 1, 1], [], []>} : vector<128x128xf32>, vector<128x128xf32>, vector<128x128xf32> -> vector<128x128xf32>
    %c0_10 = arith.constant 0 : index
    %c0_11 = arith.constant 0 : index
    %13 = vector.load %arg14[%c0_10, %c0_11] : memref<1x128xf32, #tpu.memory_space<vmem>>, vector<1x128xf32>
    %14 = vector.broadcast %13 : vector<1x128xf32> to vector<128x128xf32>
    %15 = arith.addf %12, %14 : vector<128x128xf32>
    %c0_12 = arith.constant 0 : index
    %c0_13 = arith.constant 0 : index
    %16 = vector.load %arg15[%c0_12, %c0_13] : memref<128x256xf32, #tpu.memory_space<vmem>>, vector<128x256xf32>
    %cst_14 = arith.constant dense<0.000000e+00> : vector<128x256xf32>
    %17 = tpu.matmul %15, %16, %cst_14 {dimension_numbers = #tpu.dot_dimension_numbers<[1], [0], [0], [1], [0, 0, 1, 1], [], []>} : vector<128x128xf32>, vector<128x256xf32>, vector<128x256xf32> -> vector<128x256xf32>
    %c0_15 = arith.constant 0 : index
    %c0_16 = arith.constant 0 : index
    %18 = vector.load %arg16[%c0_15, %c0_16] : memref<1x256xf32, #tpu.memory_space<vmem>>, vector<1x256xf32>
    %19 = vector.broadcast %18 : vector<1x256xf32> to vector<128x256xf32>
    %20 = arith.addf %17, %19 : vector<128x256xf32>
    %21 = vector.extract_strided_slice %20 {offsets = [0, 0], sizes = [128, 128], strides = [1, 1]} : vector<128x256xf32> to vector<128x128xf32>
    %22 = arith.negf %21 : vector<128x128xf32>
    %23 = math.exp %22 : vector<128x128xf32>
    %cst_17 = arith.constant 1.000000e+00 : f32
    %24 = vector.broadcast %cst_17 : f32 to vector<128x128xf32>
    %25 = arith.addf %24, %23 : vector<128x128xf32>
    %26 = arith.divf %24, %25 : vector<128x128xf32>
    %27 = vector.extract_strided_slice %20 {offsets = [0, 128], sizes = [128, 128], strides = [1, 1]} : vector<128x256xf32> to vector<128x128xf32>
    %c0_18 = arith.constant 0 : index
    %c0_19 = arith.constant 0 : index
    %28 = vector.load %arg4[%c0_18, %c0_19] : memref<128x128xbf16, #tpu.memory_space<vmem>>, vector<128x128xbf16>
    %29 = arith.extf %28 : vector<128x128xbf16> to vector<128x128xf32>
    %c0_20 = arith.constant 0 : index
    %c0_21 = arith.constant 0 : index
    %30 = vector.load %arg18[%c0_20, %c0_21] : memref<128x128xf32, #tpu.memory_space<vmem>>, vector<128x128xf32>
    %cst_22 = arith.constant dense<0.000000e+00> : vector<128x128xf32>
    %31 = tpu.matmul %29, %30, %cst_22 {dimension_numbers = #tpu.dot_dimension_numbers<[1], [0], [0], [1], [0, 0, 1, 1], [], []>} : vector<128x128xf32>, vector<128x128xf32>, vector<128x128xf32> -> vector<128x128xf32>
    %32 = arith.mulf %26, %31 : vector<128x128xf32>
    %33 = arith.addf %32, %27 : vector<128x128xf32>
    %cst_23 = arith.constant 1.000000e+00 : f32
    %34 = vector.broadcast %cst_23 : f32 to vector<128x128xf32>
    %35 = arith.subf %33, %34 : vector<128x128xf32>
    %36 = arith.mulf %33, %35 : vector<128x128xf32>
    %c0_24 = arith.constant 0 : index
    %c0_25 = arith.constant 0 : index
    %37 = vector.load %arg19[%c0_24, %c0_25] : memref<64x128xf32, #tpu.memory_space<vmem>>, vector<64x128xf32>
    %c0_26 = arith.constant 0 : index
    %c0_27 = arith.constant 0 : index
    %38 = vector.load %arg5[%c0_26, %c0_27] : memref<64x128xbf16, #tpu.memory_space<vmem>>, vector<64x128xbf16>
    %39 = arith.extf %38 : vector<64x128xbf16> to vector<64x128xf32>
    %cst_28 = arith.constant dense<0.000000e+00> : vector<64x128xf32>
    %40 = tpu.matmul %39, %36, %cst_28 {dimension_numbers = #tpu.dot_dimension_numbers<[1], [0], [0], [1], [0, 0, 1, 1], [], []>} : vector<64x128xf32>, vector<128x128xf32>, vector<64x128xf32> -> vector<64x128xf32>
    %41 = arith.addf %37, %40 : vector<64x128xf32>
    %c0_29 = arith.constant 0 : index
    %c0_30 = arith.constant 0 : index
    %42 = vector.load %arg19[%c0_29, %c0_30] : memref<64x128xf32, #tpu.memory_space<vmem>>, vector<64x128xf32>
    tpu.vector_store %arg19[%c0_29, %c0_30], %41 {strides = array<i32>} : memref<64x128xf32, #tpu.memory_space<vmem>>, vector<64x128xf32>,
    %c3_i32 = arith.constant 3 : i32
    %43 = arith.cmpi eq, %arg1, %c3_i32 : i32
    %44 = arith.extui %43 : i1 to i32
    %c0_i32_31 = arith.constant 0 : i32
    %45 = arith.cmpi ne, %44, %c0_i32_31 : i32
    scf.if %45 {
      %c0_32 = arith.constant 0 : index
      %c0_33 = arith.constant 0 : index
      %46 = vector.load %arg19[%c0_32, %c0_33] : memref<64x128xf32, #tpu.memory_space<vmem>>, vector<64x128xf32>
      %c0_34 = arith.constant 0 : index
      %c0_35 = arith.constant 0 : index
      %47 = vector.load %arg6[%c0_34, %c0_35] : memref<64x1xf32, #tpu.memory_space<vmem>>, vector<64x1xf32>
      %48 = vector.broadcast %47 : vector<64x1xf32> to vector<64x128xf32>
      %49 = arith.mulf %46, %48 : vector<64x128xf32>
      %cst_36 = arith.constant 0.000000e+00 : f32
      %50 = vector.broadcast %cst_36 : f32 to vector<64x128xf32>
      %51 = arith.maximumf %49, %50 : vector<64x128xf32>
      %cst_37 = arith.constant 9.99999974E-6 : f32
      %52 = vector.broadcast %cst_37 : f32 to vector<64x128xf32>
      %53 = arith.addf %51, %52 : vector<64x128xf32>
      %54 = math.sqrt %53 : vector<64x128xf32>
      %c0_38 = arith.constant 0 : index
      %c0_39 = arith.constant 0 : index
      %55 = vector.load %arg17[%c0_38, %c0_39] : memref<64x128xf32, #tpu.memory_space<vmem>>, vector<64x128xf32>
      tpu.vector_store %arg17[%c0_38, %c0_39], %54 {strides = array<i32>} : memref<64x128xf32, #tpu.memory_space<vmem>>, vector<64x128xf32>,
    } else {
    }
    return
  }
  func.func @transform_0(%arg0: i32, %arg1: i32) -> (i32, i32) {
    %c0_i32 = arith.constant 0 : i32
    %c0_i32_0 = arith.constant 0 : i32
    %c0_i32_1 = arith.constant 0 : i32
    return %c0_i32, %c0_i32_0 : i32, i32
  }
  func.func @transform_1(%arg0: i32, %arg1: i32) -> (i32, i32) {
    %c0_i32 = arith.constant 0 : i32
    %c0_i32_0 = arith.constant 0 : i32
    return %arg1, %c0_i32 : i32, i32
  }
  func.func @transform_2(%arg0: i32, %arg1: i32) -> (i32, i32) {
    %c0_i32 = arith.constant 0 : i32
    %c0_i32_0 = arith.constant 0 : i32
    return %arg1, %c0_i32 : i32, i32
  }
  func.func @transform_3(%arg0: i32, %arg1: i32) -> (i32, i32) {
    %c0_i32 = arith.constant 0 : i32
    return %arg0, %arg1 : i32, i32
  }
  func.func @transform_4(%arg0: i32, %arg1: i32) -> (i32, i32) {
    %c0_i32 = arith.constant 0 : i32
    %c0_i32_0 = arith.constant 0 : i32
    return %arg0, %c0_i32 : i32, i32
  }
  func.func @transform_5(%arg0: i32, %arg1: i32) -> (i32, i32) {
    %c0_i32 = arith.constant 0 : i32
    %c0_i32_0 = arith.constant 0 : i32
    %c0_i32_1 = arith.constant 0 : i32
    return %c0_i32, %c0_i32_0 : i32, i32
  }
  func.func @transform_6(%arg0: i32, %arg1: i32) -> (i32, i32) {
    %c0_i32 = arith.constant 0 : i32
    %c0_i32_0 = arith.constant 0 : i32
    %c0_i32_1 = arith.constant 0 : i32
    return %c0_i32, %c0_i32_0 : i32, i32
  }
  func.func @transform_7(%arg0: i32, %arg1: i32) -> (i32, i32) {
    %c0_i32 = arith.constant 0 : i32
    %c0_i32_0 = arith.constant 0 : i32
    %c0_i32_1 = arith.constant 0 : i32
    return %c0_i32, %c0_i32_0 : i32, i32
  }
  func.func @transform_8(%arg0: i32, %arg1: i32) -> (i32, i32) {
    %c0_i32 = arith.constant 0 : i32
    %c0_i32_0 = arith.constant 0 : i32
    %c0_i32_1 = arith.constant 0 : i32
    return %c0_i32, %c0_i32_0 : i32, i32
  }
  func.func @transform_9(%arg0: i32, %arg1: i32) -> (i32, i32) {
    %c0_i32 = arith.constant 0 : i32
    %c0_i32_0 = arith.constant 0 : i32
    %c0_i32_1 = arith.constant 0 : i32
    return %c0_i32, %c0_i32_0 : i32, i32
  }
  func.func @transform_10(%arg0: i32, %arg1: i32) -> (i32, i32) {
    %c0_i32 = arith.constant 0 : i32
    %c0_i32_0 = arith.constant 0 : i32
    %c0_i32_1 = arith.constant 0 : i32
    return %c0_i32, %c0_i32_0 : i32, i32
  }
  func.func @transform_11(%arg0: i32, %arg1: i32) -> (i32, i32) {
    %c0_i32 = arith.constant 0 : i32
    %c0_i32_0 = arith.constant 0 : i32
    %c0_i32_1 = arith.constant 0 : i32
    return %c0_i32, %c0_i32_0 : i32, i32
  }
  func.func @transform_12(%arg0: i32, %arg1: i32) -> (i32, i32) {
    %c0_i32 = arith.constant 0 : i32
    %c0_i32_0 = arith.constant 0 : i32
    %c0_i32_1 = arith.constant 0 : i32
    return %c0_i32, %c0_i32_0 : i32, i32
  }
  func.func @transform_13(%arg0: i32, %arg1: i32) -> (i32, i32) {
    %c0_i32 = arith.constant 0 : i32
    %c0_i32_0 = arith.constant 0 : i32
    %c0_i32_1 = arith.constant 0 : i32
    return %c0_i32, %c0_i32_0 : i32, i32
  }
  func.func @transform_14(%arg0: i32, %arg1: i32) -> (i32, i32) {
    %c0_i32 = arith.constant 0 : i32
    %c0_i32_0 = arith.constant 0 : i32
    %c0_i32_1 = arith.constant 0 : i32
    return %c0_i32, %c0_i32_0 : i32, i32
  }
  func.func @transform_15(%arg0: i32, %arg1: i32) -> (i32, i32) {
    %c0_i32 = arith.constant 0 : i32
    %c0_i32_0 = arith.constant 0 : i32
    return %arg0, %c0_i32 : i32, i32
  }
}

</mosaic_0001>

<llo_original>
// kernel: tpu_custom_call.1
$region0: #{tpu_custom_call.1}
  #allocation0 [shape = 'u32[]', space=smem, size = 0x4, offset = 0x4, fixed_abs, tag = 'smem constant byte address 0x4 - core index']
  #allocation1 [shape = 'u32[72,128]{1,0:T(1,128)}', space=vmem, size = 0x9000, scoped, tag = 'internal scratch']
  #allocation2 [shape = 'f32[128,128]{1,0:T(8,128)}', space=vmem, size = 0x10000, scoped, tag = 'scratch operand']
  #allocation3 [shape = 'f32[64,128]{1,0:T(8,128)}', space=vmem, size = 0x8000, scoped, tag = 'scratch operand']
  %s0 = inlined_call_operand.vmem [shape: f32[128,128], index: 0, kind: input, shape index: {}]
  %s1 = inlined_call_operand.hbm [shape: f32[512,128], index: 1, kind: input, shape index: {}]
  %s2 = inlined_call_operand.hbm [shape: bf16[512,128], index: 2, kind: input, shape index: {}]
  %s3 = inlined_call_operand.hbm [shape: bf16[128,512], index: 3, kind: input, shape index: {}]
  %s4 = inlined_call_operand.vmem [shape: f32[128,1], index: 4, kind: input, shape index: {}]
  %s5 = inlined_call_operand.hbm [shape: f32[128,128], index: 5, kind: input, shape index: {}]
  %s6 = inlined_call_operand.vmem [shape: f32[1,128], index: 6, kind: input, shape index: {}]
  %s7 = inlined_call_operand.hbm [shape: f32[128,128], index: 7, kind: input, shape index: {}]
  %s8 = inlined_call_operand.vmem [shape: f32[1,128], index: 8, kind: input, shape index: {}]
  %s9 = inlined_call_operand.hbm [shape: f32[128,128], index: 9, kind: input, shape index: {}]
  %s10 = inlined_call_operand.vmem [shape: f32[1,128], index: 10, kind: input, shape index: {}]
  %s11 = inlined_call_operand.hbm [shape: f32[128,128], index: 11, kind: input, shape index: {}]
  %s12 = inlined_call_operand.vmem [shape: f32[1,128], index: 12, kind: input, shape index: {}]
  %s13 = inlined_call_operand.hbm [shape: f32[128,256], index: 13, kind: input, shape index: {}]
  %s14 = inlined_call_operand.vmem [shape: f32[1,256], index: 14, kind: input, shape index: {}]
  %s15 = inlined_call_operand.hbm [shape: f32[128,128], index: 15, kind: output, shape index: {}]
  %s16 = sld [smem:[#allocation0]]
  $region133: #{tpu_custom_call.1} parent=0
    _
  %s18 = ssub.s32 1, %s16
  %s19 = scalar_select 0, %s18, %s16
  $region1: #{tpu_custom_call.1} parent=0
    #allocation4 [shape = 'u8[131072]{0}', space=vmem, size = 0x20000, scoped, tag = 'input window, operand 1']
    #allocation5 [shape = 's32[2]{0}', space=sflag, size = 0x8, scoped, tag = 'scoped memory for tpu_custom_call.1']
    #allocation6 [shape = 's32[2]{0}', space=sflag, size = 0x8, scoped, tag = 'scoped memory for tpu_custom_call.1']
    #allocation7 [shape = 'u8[65536]{0}', space=vmem, size = 0x10000, scoped, tag = 'input window, operand 2']
    #allocation8 [shape = 's32[2]{0}', space=sflag, size = 0x8, scoped, tag = 'scoped memory for tpu_custom_call.1']
    #allocation9 [shape = 'u8[32768]{0}', space=vmem, size = 0x8000, scoped, tag = 'input window, operand 3']
    #allocation10 [shape = 'u8[65536]{0}', space=vmem, size = 0x10000, scoped, tag = 'input window, operand 5, single buffered']
    #allocation11 [shape = 's32[1]{0}', space=sflag, size = 0x4, scoped, tag = 'scoped memory for tpu_custom_call.1']
    #allocation12 [shape = 'u8[65536]{0}', space=vmem, size = 0x10000, scoped, tag = 'input window, operand 7, single buffered']
    #allocation13 [shape = 'u8[65536]{0}', space=vmem, size = 0x10000, scoped, tag = 'input window, operand 9, single buffered']
    #allocation14 [shape = 's32[1]{0}', space=sflag, size = 0x4, scoped, tag = 'scoped memory for tpu_custom_call.1']
    #allocation15 [shape = 'u8[65536]{0}', space=vmem, size = 0x10000, scoped, tag = 'input window, operand 11, single buffered']
    #allocation16 [shape = 'u8[131072]{0}', space=vmem, size = 0x20000, scoped, tag = 'input window, operand 13, single buffered']
    #allocation17 [shape = 's32[1]{0}', space=sflag, size = 0x4, scoped, tag = 'scoped memory for tpu_custom_call.1']
    #allocation18 [shape = 'u8[65536]{0}', space=vmem, size = 0x10000, scoped, tag = 'output window, operand 0']
    %20 = vsyncpa [#allocation5], 0
    %s21 = scalar_lea.sflag [#allocation5], 1
    %22 = vsyncpa %s21, 0
    %23 = vsyncpa [#allocation8], 0
    %s24 = scalar_lea.sflag [#allocation8], 1
    %25 = vsyncpa %s24, 0
    %26 = vsyncpa [#allocation11], 0
    %27 = vsyncpa [#allocation14], 0
    %28 = vsyncpa [#allocation17], 0
    %29 = vsyncpa [#allocation6], 0
    %s30 = scalar_lea.sflag [#allocation6], 1
    %31 = vsyncpa %s30, 0
    loop: start=0, step=1, limit=10
    $region2: #{tpu_custom_call.1} parent=1 // loop_pre_header
      _
    $region3: #{tpu_custom_call.1} parent=1 // loop_header
      %s33 = sphi 0, %s37
      %p34 = scmp.ge.s32.totalorder %s33, 10
      %s40 = sphi 0, %s52
      %s41 = sphi 0, %s48
      %s42 = sphi 0, %s40
      %s43 = sphi 0, %s41
      %s44 = sphi 0, %s42
      %s45 = sphi 0, %s43
      %s53 = sphi 0, %s53
      %s55 = sphi 0, %s53
      %s56 = sphi 0, %s55
      %s70 = sphi 0, %s56
      %s76 = sphi 0, %s78
      %s79 = sphi 0, %s76
      %s80 = sphi 0, %s79
      %s96 = sphi 0, %s80
      %s102 = sphi 0, %s104
      %s105 = sphi 0, %s102
      %s106 = sphi 0, %s105
      %s122 = sphi 0, %s106
      %s130 = sphi 0, %s132
      %s133 = sphi 0, %s130
      %s134 = sphi 0, %s133
      %s150 = sphi 0, %s134
      %s156 = sphi 0, %s158
      %s159 = sphi 0, %s156
      %s160 = sphi 0, %s159
      %s176 = sphi 0, %s160
      %s180 = sphi 0, %s180
      %s182 = sphi 0, %s180
      %s183 = sphi 0, %s182
      %s197 = sphi 0, %s183
      %s201 = sphi 0, %s201
      %s203 = sphi 0, %s201
      %s204 = sphi 0, %s203
      %s218 = sphi 0, %s204
      %s222 = sphi 0, %s222
      %s224 = sphi 0, %s222
      %s225 = sphi 0, %s224
      %s239 = sphi 0, %s225
      %s243 = sphi 0, %s243
      %s245 = sphi 0, %s243
      %s246 = sphi 0, %s245
      %s260 = sphi 0, %s246
      %s264 = sphi 0, %s264
      %s266 = sphi 0, %s264
      %s267 = sphi 0, %s266
      %s281 = sphi 0, %s267
      %s285 = sphi 0, %s285
      %s287 = sphi 0, %s285
      %s288 = sphi 0, %s287
      %s302 = sphi 0, %s288
      %s306 = sphi 0, %s306
      %s308 = sphi 0, %s306
      %s309 = sphi 0, %s308
      %s323 = sphi 0, %s309
      %s327 = sphi 0, %s327
      %s329 = sphi 0, %s327
      %s330 = sphi 0, %s329
      %s344 = sphi 0, %s330
      %s348 = sphi 0, %s348
      %s350 = sphi 0, %s348
      %s351 = sphi 0, %s350
      %s365 = sphi 0, %s351
      %s369 = sphi 0, %s369
      %s371 = sphi 0, %s369
      %s372 = sphi 0, %s371
      %s386 = sphi 0, %s372
      %s392 = sphi 0, %s394
      %s395 = sphi 0, %s392
      %s396 = sphi 0, %s395
      %s412 = sphi 0, %s396
    $region4: #{tpu_custom_call.1} parent=1 // loop_header_branch
      %36 = sbr.rel (%p34) target = $region8
    $region5: #{tpu_custom_call.1} parent=1 // loop_body
      %s38 = ssub.s32 %s33, 1
      %s39 = ssub.s32 %s33, 2
      %s46 = sadd.s32 1, %s41
      %p47 = scmp.ge.s32.totalorder %s46, 4
      %s48 = scalar_select %p47, 0, %s46
      %s49 = sadd.s32 1, %s40
      %s50 = scalar_select %p47, %s49, %s40
      %p51 = scmp.ge.s32.totalorder %s50, 2
      %s52 = scalar_select %p51, 0, %s50
      %s54 = sadd.s32 %s53, 1
      %p57 = scmp.eq.s32.totalorder %s33, 7
      %p58 = scmp.ne.s32.totalorder %s53, %s55
      %p59 = scmp.eq.s32.totalorder %s33, 0
      %p60 = por %p58, %p59
      %p61 = scmp.ne.s32.totalorder %s53, %s55
      %p62 = scmp.eq.s32.totalorder %s38, 7
      %p63 = por %p61, %p62
      %p64 = scmp.ne.s32.totalorder %s55, %s56
      %p65 = scmp.eq.s32.totalorder %s38, 0
      %p66 = por %p64, %p65
      %p67 = scmp.ne.s32.totalorder %s55, %s56
      %p68 = scmp.eq.s32.totalorder %s39, 7
      %p69 = por %p67, %p68
      %p71 = scmp.ne.s32.totalorder %s56, %s70
      %p72 = scmp.eq.s32.totalorder %s39, 0
      %p73 = por %p71, %p72
      %s74 = ssub.s32 %s41, %s48
      %p75 = scmp.eq.s32.totalorder %s74, 0
      %s77 = sadd.s32 %s76, 1
      %s78 = scalar_select %p75, %s76, %s77
      %p81 = pneg %p75
      %p82 = scmp.eq.s32.totalorder %s33, 7
      %p83 = por %p81, %p82
      %p84 = scmp.ne.s32.totalorder %s76, %s79
      %p85 = scmp.eq.s32.totalorder %s33, 0
      %p86 = por %p84, %p85
      %p87 = scmp.ne.s32.totalorder %s76, %s79
      %p88 = scmp.eq.s32.totalorder %s38, 7
      %p89 = por %p87, %p88
      %p90 = scmp.ne.s32.totalorder %s79, %s80
      %p91 = scmp.eq.s32.totalorder %s38, 0
      %p92 = por %p90, %p91
      %p93 = scmp.ne.s32.totalorder %s79, %s80
      %p94 = scmp.eq.s32.totalorder %s39, 7
      %p95 = por %p93, %p94
      %p97 = scmp.ne.s32.totalorder %s80, %s96
      %p98 = scmp.eq.s32.totalorder %s39, 0
      %p99 = por %p97, %p98
      %s100 = ssub.s32 %s41, %s48
      %p101 = scmp.eq.s32.totalorder %s100, 0
      %s103 = sadd.s32 %s102, 1
      %s104 = scalar_select %p101, %s102, %s103
      %p107 = pneg %p101
      %p108 = scmp.eq.s32.totalorder %s33, 7
      %p109 = por %p107, %p108
      %p110 = scmp.ne.s32.totalorder %s102, %s105
      %p111 = scmp.eq.s32.totalorder %s33, 0
      %p112 = por %p110, %p111
      %p113 = scmp.ne.s32.totalorder %s102, %s105
      %p114 = scmp.eq.s32.totalorder %s38, 7
      %p115 = por %p113, %p114
      %p116 = scmp.ne.s32.totalorder %s105, %s106
      %p117 = scmp.eq.s32.totalorder %s38, 0
      %p118 = por %p116, %p117
      %p119 = scmp.ne.s32.totalorder %s105, %s106
      %p120 = scmp.eq.s32.totalorder %s39, 7
      %p121 = por %p119, %p120
      %p123 = scmp.ne.s32.totalorder %s106, %s122
      %p124 = scmp.eq.s32.totalorder %s39, 0
      %p125 = por %p123, %p124
      %s126 = ssub.s32 %s40, %s52
      %s127 = ssub.s32 %s41, %s48
      %s128 = sor.u32 %s126, %s127
      %p129 = scmp.eq.s32.totalorder %s128, 0
      %s131 = sadd.s32 %s130, 1
      %s132 = scalar_select %p129, %s130, %s131
      %p135 = pneg %p129
      %p136 = scmp.eq.s32.totalorder %s33, 7
      %p137 = por %p135, %p136
      %p138 = scmp.ne.s32.totalorder %s130, %s133
      %p139 = scmp.eq.s32.totalorder %s33, 0
      %p140 = por %p138, %p139
      %p141 = scmp.ne.s32.totalorder %s130, %s133
      %p142 = scmp.eq.s32.totalorder %s38, 7
      %p143 = por %p141, %p142
      %p144 = scmp.ne.s32.totalorder %s133, %s134
      %p145 = scmp.eq.s32.totalorder %s38, 0
      %p146 = por %p144, %p145
      %p147 = scmp.ne.s32.totalorder %s133, %s134
      %p148 = scmp.eq.s32.totalorder %s39, 7
      %p149 = por %p147, %p148
      %p151 = scmp.ne.s32.totalorder %s134, %s150
      %p152 = scmp.eq.s32.totalorder %s39, 0
      %p153 = por %p151, %p152
      %s154 = ssub.s32 %s40, %s52
      %p155 = scmp.eq.s32.totalorder %s154, 0
      %s157 = sadd.s32 %s156, 1
      %s158 = scalar_select %p155, %s156, %s157
      %p161 = pneg %p155
      %p162 = scmp.eq.s32.totalorder %s33, 7
      %p163 = por %p161, %p162
      %p164 = scmp.ne.s32.totalorder %s156, %s159
      %p165 = scmp.eq.s32.totalorder %s33, 0
      %p166 = por %p164, %p165
      %p167 = scmp.ne.s32.totalorder %s156, %s159
      %p168 = scmp.eq.s32.totalorder %s38, 7
      %p169 = por %p167, %p168
      %p170 = scmp.ne.s32.totalorder %s159, %s160
      %p171 = scmp.eq.s32.totalorder %s38, 0
      %p172 = por %p170, %p171
      %p173 = scmp.ne.s32.totalorder %s159, %s160
      %p174 = scmp.eq.s32.totalorder %s39, 7
      %p175 = por %p173, %p174
      %p177 = scmp.ne.s32.totalorder %s160, %s176
      %p178 = scmp.eq.s32.totalorder %s39, 0
      %p179 = por %p177, %p178
      %s181 = sadd.s32 %s180, 1
      %p184 = scmp.eq.s32.totalorder %s33, 7
      %p185 = scmp.ne.s32.totalorder %s180, %s182
      %p186 = scmp.eq.s32.totalorder %s33, 0
      %p187 = por %p185, %p186
      %p188 = scmp.ne.s32.totalorder %s180, %s182
      %p189 = scmp.eq.s32.totalorder %s38, 7
      %p190 = por %p188, %p189
      %p191 = scmp.ne.s32.totalorder %s182, %s183
      %p192 = scmp.eq.s32.totalorder %s38, 0
      %p193 = por %p191, %p192
      %p194 = scmp.ne.s32.totalorder %s182, %s183
      %p195 = scmp.eq.s32.totalorder %s39, 7
      %p196 = por %p194, %p195
      %p198 = scmp.ne.s32.totalorder %s183, %s197
      %p199 = scmp.eq.s32.totalorder %s39, 0
      %p200 = por %p198, %p199
      %s202 = sadd.s32 %s201, 1
      %p205 = scmp.eq.s32.totalorder %s33, 7
      %p206 = scmp.ne.s32.totalorder %s201, %s203
      %p207 = scmp.eq.s32.totalorder %s33, 0
      %p208 = por %p206, %p207
      %p209 = scmp.ne.s32.totalorder %s201, %s203
      %p210 = scmp.eq.s32.totalorder %s38, 7
      %p211 = por %p209, %p210
      %p212 = scmp.ne.s32.totalorder %s203, %s204
      %p213 = scmp.eq.s32.totalorder %s38, 0
      %p214 = por %p212, %p213
      %p215 = scmp.ne.s32.totalorder %s203, %s204
      %p216 = scmp.eq.s32.totalorder %s39, 7
      %p217 = por %p215, %p216
      %p219 = scmp.ne.s32.totalorder %s204, %s218
      %p220 = scmp.eq.s32.totalorder %s39, 0
      %p221 = por %p219, %p220
      %s223 = sadd.s32 %s222, 1
      %p226 = scmp.eq.s32.totalorder %s33, 7
      %p227 = scmp.ne.s32.totalorder %s222, %s224
      %p228 = scmp.eq.s32.totalorder %s33, 0
      %p229 = por %p227, %p228
      %p230 = scmp.ne.s32.totalorder %s222, %s224
      %p231 = scmp.eq.s32.totalorder %s38, 7
      %p232 = por %p230, %p231
      %p233 = scmp.ne.s32.totalorder %s224, %s225
      %p234 = scmp.eq.s32.totalorder %s38, 0
      %p235 = por %p233, %p234
      %p236 = scmp.ne.s32.totalorder %s224, %s225
      %p237 = scmp.eq.s32.totalorder %s39, 7
      %p238 = por %p236, %p237
      %p240 = scmp.ne.s32.totalorder %s225, %s239
      %p241 = scmp.eq.s32.totalorder %s39, 0
      %p242 = por %p240, %p241
      %s244 = sadd.s32 %s243, 1
      %p247 = scmp.eq.s32.totalorder %s33, 7
      %p248 = scmp.ne.s32.totalorder %s243, %s245
      %p249 = scmp.eq.s32.totalorder %s33, 0
      %p250 = por %p248, %p249
      %p251 = scmp.ne.s32.totalorder %s243, %s245
      %p252 = scmp.eq.s32.totalorder %s38, 7
      %p253 = por %p251, %p252
      %p254 = scmp.ne.s32.totalorder %s245, %s246
      %p255 = scmp.eq.s32.totalorder %s38, 0
      %p256 = por %p254, %p255
      %p257 = scmp.ne.s32.totalorder %s245, %s246
      %p258 = scmp.eq.s32.totalorder %s39, 7
      %p259 = por %p257, %p258
      %p261 = scmp.ne.s32.totalorder %s246, %s260
      %p262 = scmp.eq.s32.totalorder %s39, 0
      %p263 = por %p261, %p262
      %s265 = sadd.s32 %s264, 1
      %p268 = scmp.eq.s32.totalorder %s33, 7
      %p269 = scmp.ne.s32.totalorder %s264, %s266
      %p270 = scmp.eq.s32.totalorder %s33, 0
      %p271 = por %p269, %p270
      %p272 = scmp.ne.s32.totalorder %s264, %s266
      %p273 = scmp.eq.s32.totalorder %s38, 7
      %p274 = por %p272, %p273
      %p275 = scmp.ne.s32.totalorder %s266, %s267
      %p276 = scmp.eq.s32.totalorder %s38, 0
      %p277 = por %p275, %p276
      %p278 = scmp.ne.s32.totalorder %s266, %s267
      %p279 = scmp.eq.s32.totalorder %s39, 7
      %p280 = por %p278, %p279
      %p282 = scmp.ne.s32.totalorder %s267, %s281
      %p283 = scmp.eq.s32.totalorder %s39, 0
      %p284 = por %p282, %p283
      %s286 = sadd.s32 %s285, 1
      %p289 = scmp.eq.s32.totalorder %s33, 7
      %p290 = scmp.ne.s32.totalorder %s285, %s287
      %p291 = scmp.eq.s32.totalorder %s33, 0
      %p292 = por %p290, %p291
      %p293 = scmp.ne.s32.totalorder %s285, %s287
      %p294 = scmp.eq.s32.totalorder %s38, 7
      %p295 = por %p293, %p294
      %p296 = scmp.ne.s32.totalorder %s287, %s288
      %p297 = scmp.eq.s32.totalorder %s38, 0
      %p298 = por %p296, %p297
      %p299 = scmp.ne.s32.totalorder %s287, %s288
      %p300 = scmp.eq.s32.totalorder %s39, 7
      %p301 = por %p299, %p300
      %p303 = scmp.ne.s32.totalorder %s288, %s302
      %p304 = scmp.eq.s32.totalorder %s39, 0
      %p305 = por %p303, %p304
      %s307 = sadd.s32 %s306, 1
      %p310 = scmp.eq.s32.totalorder %s33, 7
      %p311 = scmp.ne.s32.totalorder %s306, %s308
      %p312 = scmp.eq.s32.totalorder %s33, 0
      %p313 = por %p311, %p312
      %p314 = scmp.ne.s32.totalorder %s306, %s308
      %p315 = scmp.eq.s32.totalorder %s38, 7
      %p316 = por %p314, %p315
      %p317 = scmp.ne.s32.totalorder %s308, %s309
      %p318 = scmp.eq.s32.totalorder %s38, 0
      %p319 = por %p317, %p318
      %p320 = scmp.ne.s32.totalorder %s308, %s309
      %p321 = scmp.eq.s32.totalorder %s39, 7
      %p322 = por %p320, %p321
      %p324 = scmp.ne.s32.totalorder %s309, %s323
      %p325 = scmp.eq.s32.totalorder %s39, 0
      %p326 = por %p324, %p325
      %s328 = sadd.s32 %s327, 1
      %p331 = scmp.eq.s32.totalorder %s33, 7
      %p332 = scmp.ne.s32.totalorder %s327, %s329
      %p333 = scmp.eq.s32.totalorder %s33, 0
      %p334 = por %p332, %p333
      %p335 = scmp.ne.s32.totalorder %s327, %s329
      %p336 = scmp.eq.s32.totalorder %s38, 7
      %p337 = por %p335, %p336
      %p338 = scmp.ne.s32.totalorder %s329, %s330
      %p339 = scmp.eq.s32.totalorder %s38, 0
      %p340 = por %p338, %p339
      %p341 = scmp.ne.s32.totalorder %s329, %s330
      %p342 = scmp.eq.s32.totalorder %s39, 7
      %p343 = por %p341, %p342
      %p345 = scmp.ne.s32.totalorder %s330, %s344
      %p346 = scmp.eq.s32.totalorder %s39, 0
      %p347 = por %p345, %p346
      %s349 = sadd.s32 %s348, 1
      %p352 = scmp.eq.s32.totalorder %s33, 7
      %p353 = scmp.ne.s32.totalorder %s348, %s350
      %p354 = scmp.eq.s32.totalorder %s33, 0
      %p355 = por %p353, %p354
      %p356 = scmp.ne.s32.totalorder %s348, %s350
      %p357 = scmp.eq.s32.totalorder %s38, 7
      %p358 = por %p356, %p357
      %p359 = scmp.ne.s32.totalorder %s350, %s351
      %p360 = scmp.eq.s32.totalorder %s38, 0
      %p361 = por %p359, %p360
      %p362 = scmp.ne.s32.totalorder %s350, %s351
      %p363 = scmp.eq.s32.totalorder %s39, 7
      %p364 = por %p362, %p363
      %p366 = scmp.ne.s32.totalorder %s351, %s365
      %p367 = scmp.eq.s32.totalorder %s39, 0
      %p368 = por %p366, %p367
      %s370 = sadd.s32 %s369, 1
      %p373 = scmp.eq.s32.totalorder %s33, 7
      %p374 = scmp.ne.s32.totalorder %s369, %s371
      %p375 = scmp.eq.s32.totalorder %s33, 0
      %p376 = por %p374, %p375
      %p377 = scmp.ne.s32.totalorder %s369, %s371
      %p378 = scmp.eq.s32.totalorder %s38, 7
      %p379 = por %p377, %p378
      %p380 = scmp.ne.s32.totalorder %s371, %s372
      %p381 = scmp.eq.s32.totalorder %s38, 0
      %p382 = por %p380, %p381
      %p383 = scmp.ne.s32.totalorder %s371, %s372
      %p384 = scmp.eq.s32.totalorder %s39, 7
      %p385 = por %p383, %p384
      %p387 = scmp.ne.s32.totalorder %s372, %s386
      %p388 = scmp.eq.s32.totalorder %s39, 0
      %p389 = por %p387, %p388
      %s390 = ssub.s32 %s40, %s52
      %p391 = scmp.eq.s32.totalorder %s390, 0
      %s393 = sadd.s32 %s392, 1
      %s394 = scalar_select %p391, %s392, %s393
      %p397 = pneg %p391
      %p398 = scmp.eq.s32.totalorder %s33, 7
      %p399 = por %p397, %p398
      %p400 = scmp.ne.s32.totalorder %s392, %s395
      %p401 = scmp.eq.s32.totalorder %s33, 0
      %p402 = por %p400, %p401
      %p403 = scmp.ne.s32.totalorder %s392, %s395
      %p404 = scmp.eq.s32.totalorder %s38, 7
      %p405 = por %p403, %p404
      %p406 = scmp.ne.s32.totalorder %s395, %s396
      %p407 = scmp.eq.s32.totalorder %s38, 0
      %p408 = por %p406, %p407
      %p409 = scmp.ne.s32.totalorder %s395, %s396
      %p410 = scmp.eq.s32.totalorder %s39, 7
      %p411 = por %p409, %p410
      %p413 = scmp.ne.s32.totalorder %s396, %s412
      %p414 = scmp.eq.s32.totalorder %s39, 0
      %p415 = por %p413, %p414
      %p416 = scmp.le.s32.totalorder 1, %s33
      %p417 = scmp.lt.s32.totalorder %s33, 9
      %p418 = pnand %p416, %p417
      %p419 = pneg %p418
      // Predicated region
      $region9: #{tpu_custom_call.1} parent=5 // pred_check
        _
      $region10: #{tpu_custom_call.1} parent=5 // pred_check_branch
        %421 = sbr.rel (%p418) target = $region12
      $region11: #{tpu_custom_call.1} parent=5 // pred_region
        %s422 = ssub.s32 %s33, 1
        // Predicated region
        $region13: #{tpu_custom_call.1} parent=11 // pred_check
          %p423 = pneg %p66
        $region14: #{tpu_custom_call.1} parent=11 // pred_check_branch
          %425 = sbr.rel (%p423) target = $region16
        $region15: #{tpu_custom_call.1} parent=11 // pred_region
          _
        $region16: #{tpu_custom_call.1} parent=11 // pred_fallthru
          _
        // Predicated region
        $region17: #{tpu_custom_call.1} parent=11 // pred_check
          %p426 = pneg %p193
        $region18: #{tpu_custom_call.1} parent=11 // pred_check_branch
          %428 = sbr.rel (%p426) target = $region20
        $region19: #{tpu_custom_call.1} parent=11 // pred_region
          %430 = vsyncadd [#allocation11], 0
          %s431 = sshll.u32 %s5, 4
          %s432 = int_to_ptr.hbm [resolvable:$true] %s431
          %s433 = sshll.u32 [#allocation10], 4
          %s434 = int_to_ptr.vmem [resolvable:$true] %s433
          %439 = dma.hbm_to_vmem [thread:$0]  %s432, 2048, %s434, [#allocation11], 128, 128, 8
        $region20: #{tpu_custom_call.1} parent=11 // pred_fallthru
          _
        // Predicated region
        $region21: #{tpu_custom_call.1} parent=11 // pred_check
          %p440 = pneg %p214
        $region22: #{tpu_custom_call.1} parent=11 // pred_check_branch
          %442 = sbr.rel (%p440) target = $region24
        $region23: #{tpu_custom_call.1} parent=11 // pred_region
          _
        $region24: #{tpu_custom_call.1} parent=11 // pred_fallthru
          _
        // Predicated region
        $region25: #{tpu_custom_call.1} parent=11 // pred_check
          %p443 = pneg %p235
        $region26: #{tpu_custom_call.1} parent=11 // pred_check_branch
          %445 = sbr.rel (%p443) target = $region28
        $region27: #{tpu_custom_call.1} parent=11 // pred_region
          %447 = vsyncadd [#allocation11], 0
          %s448 = sshll.u32 %s7, 4
          %s449 = int_to_ptr.hbm [resolvable:$true] %s448
          %s450 = sshll.u32 [#allocation12], 4
          %s451 = int_to_ptr.vmem [resolvable:$true] %s450
          %456 = dma.hbm_to_vmem [thread:$0]  %s449, 2048, %s451, [#allocation11], 128, 128, 8
        $region28: #{tpu_custom_call.1} parent=11 // pred_fallthru
          _
        // Predicated region
        $region29: #{tpu_custom_call.1} parent=11 // pred_check
          %p457 = pneg %p256
        $region30: #{tpu_custom_call.1} parent=11 // pred_check_branch
          %459 = sbr.rel (%p457) target = $region32
        $region31: #{tpu_custom_call.1} parent=11 // pred_region
          _
        $region32: #{tpu_custom_call.1} parent=11 // pred_fallthru
          _
        // Predicated region
        $region33: #{tpu_custom_call.1} parent=11 // pred_check
          %p460 = pneg %p277
        $region34: #{tpu_custom_call.1} parent=11 // pred_check_branch
          %462 = sbr.rel (%p460) target = $region36
        $region35: #{tpu_custom_call.1} parent=11 // pred_region
          %464 = vsyncadd [#allocation14], 0
          %s465 = sshll.u32 %s9, 4
          %s466 = int_to_ptr.hbm [resolvable:$true] %s465
          %s467 = sshll.u32 [#allocation13], 4
          %s468 = int_to_ptr.vmem [resolvable:$true] %s467
          %473 = dma.hbm_to_vmem [thread:$0]  %s466, 2048, %s468, [#allocation14], 128, 128, 8
        $region36: #{tpu_custom_call.1} parent=11 // pred_fallthru
          _
        // Predicated region
        $region37: #{tpu_custom_call.1} parent=11 // pred_check
          %p474 = pneg %p298
        $region38: #{tpu_custom_call.1} parent=11 // pred_check_branch
          %476 = sbr.rel (%p474) target = $region40
        $region39: #{tpu_custom_call.1} parent=11 // pred_region
          _
        $region40: #{tpu_custom_call.1} parent=11 // pred_fallthru
          _
        // Predicated region
        $region41: #{tpu_custom_call.1} parent=11 // pred_check
          %p477 = pneg %p319
        $region42: #{tpu_custom_call.1} parent=11 // pred_check_branch
          %479 = sbr.rel (%p477) target = $region44
        $region43: #{tpu_custom_call.1} parent=11 // pred_region
          %481 = vsyncadd [#allocation14], 0
          %s482 = sshll.u32 %s11, 4
          %s483 = int_to_ptr.hbm [resolvable:$true] %s482
          %s484 = sshll.u32 [#allocation15], 4
          %s485 = int_to_ptr.vmem [resolvable:$true] %s484
          %490 = dma.hbm_to_vmem [thread:$0]  %s483, 2048, %s485, [#allocation14], 128, 128, 8
        $region44: #{tpu_custom_call.1} parent=11 // pred_fallthru
          _
        // Predicated region
        $region45: #{tpu_custom_call.1} parent=11 // pred_check
          %p491 = pneg %p340
        $region46: #{tpu_custom_call.1} parent=11 // pred_check_branch
          %493 = sbr.rel (%p491) target = $region48
        $region47: #{tpu_custom_call.1} parent=11 // pred_region
          _
        $region48: #{tpu_custom_call.1} parent=11 // pred_fallthru
          _
        // Predicated region
        $region49: #{tpu_custom_call.1} parent=11 // pred_check
          %p494 = pneg %p361
        $region50: #{tpu_custom_call.1} parent=11 // pred_check_branch
          %496 = sbr.rel (%p494) target = $region52
        $region51: #{tpu_custom_call.1} parent=11 // pred_region
          %498 = vsyncadd [#allocation17], 0
          %s499 = sshll.u32 %s13, 4
          %s500 = int_to_ptr.hbm [resolvable:$true] %s499
          %s501 = sshll.u32 [#allocation16], 4
          %s502 = int_to_ptr.vmem [resolvable:$true] %s501
          %507 = dma.hbm_to_vmem [thread:$0]  %s500, 4096, %s502, [#allocation17], 256, 256, 16
        $region52: #{tpu_custom_call.1} parent=11 // pred_fallthru
          _
        // Predicated region
        $region53: #{tpu_custom_call.1} parent=11 // pred_check
          %p508 = pneg %p382
        $region54: #{tpu_custom_call.1} parent=11 // pred_check_branch
          %510 = sbr.rel (%p508) target = $region56
        $region55: #{tpu_custom_call.1} parent=11 // pred_region
          _
        $region56: #{tpu_custom_call.1} parent=11 // pred_fallthru
          _
      $region12: #{tpu_custom_call.1} parent=5 // pred_fallthru
        _
      %p511 = scmp.lt.s32.totalorder %s33, 8
      // Predicated region
      $region57: #{tpu_custom_call.1} parent=5 // pred_check
        %p512 = pneg %p511
      $region58: #{tpu_custom_call.1} parent=5 // pred_check_branch
        %514 = sbr.rel (%p512) target = $region60
      $region59: #{tpu_custom_call.1} parent=5 // pred_region
        // Predicated region
        $region61: #{tpu_custom_call.1} parent=59 // pred_check
          %p515 = pneg %p86
        $region62: #{tpu_custom_call.1} parent=59 // pred_check_branch
          %517 = sbr.rel (%p515) target = $region64
        $region63: #{tpu_custom_call.1} parent=59 // pred_region
          %s518 = sand.u32 %s76, 1
          %s519 = scalar_lea.sflag [#allocation5], %s518
          %s520 = sand.u32 %s76, 1
          %s521 = smul.addr %s520, 128
          %s522 = scalar_lea.vmem [#allocation4], %s521
          %s523 = smul.u32 16, %s41
          %525 = vsyncadd %s519, 0
          %s526 = smul.addr %s523, 8
          %s527 = scalar_lea.hbm %s1, %s526
          %s528 = sshll.u32 %s527, 4
          %s529 = int_to_ptr.hbm [resolvable:$true] %s528
          %s530 = sshll.u32 %s522, 4
          %s531 = int_to_ptr.vmem [resolvable:$true] %s530
          %536 = dma.hbm_to_vmem [thread:$0]  %s529, 2048, %s531, %s519, 128, 128, 8
        $region64: #{tpu_custom_call.1} parent=59 // pred_fallthru
          _
        // Predicated region
        $region65: #{tpu_custom_call.1} parent=59 // pred_check
          %p537 = pneg %p112
        $region66: #{tpu_custom_call.1} parent=59 // pred_check_branch
          %539 = sbr.rel (%p537) target = $region68
        $region67: #{tpu_custom_call.1} parent=59 // pred_region
          %s540 = sand.u32 %s33, 1
          %s541 = scalar_lea.sflag [#allocation8], %s540
          %s542 = sand.u32 %s102, 1
          %s543 = smul.addr %s542, 64
          %s544 = scalar_lea.vmem [#allocation7], %s543
          %s545 = smul.u32 16, %s41
          %547 = vsyncadd %s541, 0
          %s548 = smul.addr %s545, 4
          %s549 = scalar_lea.hbm %s2, %s548
          %s550 = sshll.u32 %s549, 4
          %s551 = int_to_ptr.hbm [resolvable:$true] %s550
          %s552 = sshll.u32 %s544, 4
          %s553 = int_to_ptr.vmem [resolvable:$true] %s552
          %558 = dma.hbm_to_vmem [thread:$0]  %s551, 1024, %s553, %s541, 64, 64, 4
        $region68: #{tpu_custom_call.1} parent=59 // pred_fallthru
          _
        // Predicated region
        $region69: #{tpu_custom_call.1} parent=59 // pred_check
          %p559 = pneg %p140
        $region70: #{tpu_custom_call.1} parent=59 // pred_check_branch
          %561 = sbr.rel (%p559) target = $region72
        $region71: #{tpu_custom_call.1} parent=59 // pred_region
          %s562 = sand.u32 %s33, 1
          %s563 = scalar_lea.sflag [#allocation8], %s562
          %s564 = sand.u32 %s130, 1
          %s565 = smul.addr %s564, 32
          %s566 = scalar_lea.vmem [#allocation9], %s565
          %s567 = smul.u32 8, %s40
          %569 = vsyncadd %s563, 0
          %s570 = smul.addr %s567, 4
          %s571 = sadd.s32 %s41, %s570
          %s572 = smul.addr %s571, 4
          %s573 = scalar_lea.hbm %s3, %s572
          %s574 = sshll.u32 %s573, 4
          %s575 = int_to_ptr.hbm [resolvable:$true] %s574
          %s576 = sshll.u32 %s566, 4
          %s577 = int_to_ptr.vmem [resolvable:$true] %s576
          %582 = dma.hbm_to_vmem [thread:$0]  %s575, 512, %s577, %s563, 256, 64, 4
        $region72: #{tpu_custom_call.1} parent=59 // pred_fallthru
          _
        // Predicated region
        $region73: #{tpu_custom_call.1} parent=59 // pred_check
          %p583 = pneg %p166
        $region74: #{tpu_custom_call.1} parent=59 // pred_check_branch
          %585 = sbr.rel (%p583) target = $region76
        $region75: #{tpu_custom_call.1} parent=59 // pred_region
          %s586 = smul.u32 8, %s40
          %p587 = scmp.lt.s32.totalorder %s586, 15
          %s588 = scalar_select %p587, %s586, 15
          %s589 = smul.addr %s588, 8
          %s590 = scalar_lea.vmem %s4, %s589
          %s591 = smul.u32 8, %s40
        $region76: #{tpu_custom_call.1} parent=59 // pred_fallthru
          _
      $region60: #{tpu_custom_call.1} parent=5 // pred_fallthru
        _
      %p592 = scmp.le.s32.totalorder 1, %s33
      %p593 = scmp.lt.s32.totalorder %s33, 9
      %p594 = pnand %p592, %p593
      %p595 = pneg %p594
      // Predicated region
      $region77: #{tpu_custom_call.1} parent=5 // pred_check
        _
      $region78: #{tpu_custom_call.1} parent=5 // pred_check_branch
        %597 = sbr.rel (%p594) target = $region80
      $region79: #{tpu_custom_call.1} parent=5 // pred_region
        %s598 = ssub.s32 %s33, 1
        %s599 = sand.u32 %s79, 1
        %s600 = scalar_lea.sflag [#allocation5], %s599
        %s601 = sand.u32 %s79, 1
        %s602 = smul.addr %s601, 128
        %s603 = scalar_lea.vmem [#allocation4], %s602
        // Predicated region
        $region81: #{tpu_custom_call.1} parent=79 // pred_check
          %p604 = pneg %p92
        $region82: #{tpu_custom_call.1} parent=79 // pred_check_branch
          %606 = sbr.rel (%p604) target = $region84
        $region83: #{tpu_custom_call.1} parent=79 // pred_region
          %608 = dma.done %s600, 2048
        $region84: #{tpu_custom_call.1} parent=79 // pred_fallthru
          _
        %s609 = sand.u32 %s38, 1
        %s610 = scalar_lea.sflag [#allocation8], %s609
        %s611 = sand.u32 %s105, 1
        %s612 = smul.addr %s611, 64
        %s613 = scalar_lea.vmem [#allocation7], %s612
        // Predicated region
        $region85: #{tpu_custom_call.1} parent=79 // pred_check
          %p614 = pneg %p118
        $region86: #{tpu_custom_call.1} parent=79 // pred_check_branch
          %616 = sbr.rel (%p614) target = $region88
        $region87: #{tpu_custom_call.1} parent=79 // pred_region
          %618 = dma.done %s610, 1024
        $region88: #{tpu_custom_call.1} parent=79 // pred_fallthru
          _
        %s619 = sand.u32 %s38, 1
        %s620 = scalar_lea.sflag [#allocation8], %s619
        %s621 = sand.u32 %s133, 1
        %s622 = smul.addr %s621, 32
        %s623 = scalar_lea.vmem [#allocation9], %s622
        // Predicated region
        $region89: #{tpu_custom_call.1} parent=79 // pred_check
          %p624 = pneg %p146
        $region90: #{tpu_custom_call.1} parent=79 // pred_check_branch
          %626 = sbr.rel (%p624) target = $region92
        $region91: #{tpu_custom_call.1} parent=79 // pred_region
          %628 = dma.done %s620, 512
        $region92: #{tpu_custom_call.1} parent=79 // pred_fallthru
          _
        // Predicated region
        $region93: #{tpu_custom_call.1} parent=79 // pred_check
          %p629 = pneg %p193
        $region94: #{tpu_custom_call.1} parent=79 // pred_check_branch
          %631 = sbr.rel (%p629) target = $region96
        $region95: #{tpu_custom_call.1} parent=79 // pred_region
          %633 = dma.done [#allocation11], 2048
        $region96: #{tpu_custom_call.1} parent=79 // pred_fallthru
          _
        // Predicated region
        $region97: #{tpu_custom_call.1} parent=79 // pred_check
          %p634 = pneg %p235
        $region98: #{tpu_custom_call.1} parent=79 // pred_check_branch
          %636 = sbr.rel (%p634) target = $region100
        $region99: #{tpu_custom_call.1} parent=79 // pred_region
          %638 = dma.done [#allocation11], 2048
        $region100: #{tpu_custom_call.1} parent=79 // pred_fallthru
          _
        // Predicated region
        $region101: #{tpu_custom_call.1} parent=79 // pred_check
          %p639 = pneg %p277
        $region102: #{tpu_custom_call.1} parent=79 // pred_check_branch
          %641 = sbr.rel (%p639) target = $region104
        $region103: #{tpu_custom_call.1} parent=79 // pred_region
          %643 = dma.done [#allocation14], 2048
        $region104: #{tpu_custom_call.1} parent=79 // pred_fallthru
          _
        // Predicated region
        $region105: #{tpu_custom_call.1} parent=79 // pred_check
          %p644 = pneg %p319
        $region106: #{tpu_custom_call.1} parent=79 // pred_check_branch
          %646 = sbr.rel (%p644) target = $region108
        $region107: #{tpu_custom_call.1} parent=79 // pred_region
          %648 = dma.done [#allocation14], 2048
        $region108: #{tpu_custom_call.1} parent=79 // pred_fallthru
          _
        // Predicated region
        $region109: #{tpu_custom_call.1} parent=79 // pred_check
          %p649 = pneg %p361
        $region110: #{tpu_custom_call.1} parent=79 // pred_check_branch
          %651 = sbr.rel (%p649) target = $region112
        $region111: #{tpu_custom_call.1} parent=79 // pred_region
          %653 = dma.done [#allocation17], 4096
        $region112: #{tpu_custom_call.1} parent=79 // pred_fallthru
          _
        %p654 = pneg %p66
        %p655 = pneg %p63
        %s656 = sand.u32 %s79, 1
        %s657 = scalar_lea.sflag [#allocation5], %s656
        %s658 = sand.u32 %s79, 1
        %s659 = smul.addr %s658, 128
        %s660 = scalar_lea.vmem [#allocation4], %s659
        %p661 = pneg %p92
        %p662 = pneg %p89
        %s663 = sand.u32 %s38, 1
        %s664 = scalar_lea.sflag [#allocation8], %s663
        %s665 = sand.u32 %s105, 1
        %s666 = smul.addr %s665, 64
        %s667 = scalar_lea.vmem [#allocation7], %s666
        %p668 = pneg %p118
        %p669 = pneg %p115
        %s670 = sand.u32 %s38, 1
        %s671 = scalar_lea.sflag [#allocation8], %s670
        %s672 = sand.u32 %s133, 1
        %s673 = smul.addr %s672, 32
        %s674 = scalar_lea.vmem [#allocation9], %s673
        %p675 = pneg %p146
        %p676 = pneg %p143
        %s677 = smul.u32 8, %s42
        %p678 = scmp.lt.s32.totalorder %s677, 15
        %s679 = scalar_select %p678, %s677, 15
        %s680 = smul.addr %s679, 8
        %s681 = scalar_lea.vmem %s4, %s680
        %p682 = pneg %p172
        %p683 = pneg %p169
        %p684 = pneg %p193
        %p685 = pneg %p190
        %p686 = pneg %p214
        %p687 = pneg %p211
        %p688 = pneg %p235
        %p689 = pneg %p232
        %p690 = pneg %p256
        %p691 = pneg %p253
        %p692 = pneg %p277
        %p693 = pneg %p274
        %p694 = pneg %p298
        %p695 = pneg %p295
        %p696 = pneg %p319
        %p697 = pneg %p316
        %p698 = pneg %p340
        %p699 = pneg %p337
        %p700 = pneg %p361
        %p701 = pneg %p358
        %p702 = pneg %p382
        %p703 = pneg %p379
        %p704 = pneg %p408
        %p705 = pneg %p405
        %s706 = sand.u32 %s395, 1
        %s707 = scalar_lea.sflag [#allocation6], %s706
        %s708 = sand.u32 %s395, 1
        %s709 = smul.addr %s708, 64
        %s710 = scalar_lea.vmem [#allocation18], %s709
        %s711 = smul.u32 16, %s43
        %s712 = smul.u32 16, %s43
        %s713 = smul.u32 8, %s42
        %s714 = smul.u32 8, %s42
        %p715 = scmp.lt.s32.totalorder %s714, 15
        %s716 = scalar_select %p715, %s714, 15
        %s717 = smul.addr %s716, 8
        %s718 = scalar_lea.vmem %s4, %s717
        %s719 = smul.u32 8, %s42
        %s720 = smul.u32 8, %s42
        %p721 = scmp.eq.s32.totalorder %s43, 0
        // Predicated region
        $region113: #{tpu_custom_call.1} parent=79 // pred_check
          %p722 = pneg %p721
        $region114: #{tpu_custom_call.1} parent=79 // pred_check_branch
          %724 = sbr.rel (%p722) target = $region116
        $region115: #{tpu_custom_call.1} parent=79 // pred_region
          %v725 = vld [vmem:[%s0] sm:$0xff]
          %v726 = vld [vmem:[%s0 + $0x8] sm:$0xff]
          %v727 = vld [vmem:[%s0 + $0x10] sm:$0xff]
          %v728 = vld [vmem:[%s0 + $0x18] sm:$0xff]
          %v729 = vld [vmem:[%s0 + $0x20] sm:$0xff]
          %v730 = vld [vmem:[%s0 + $0x28] sm:$0xff]
          %v731 = vld [vmem:[%s0 + $0x30] sm:$0xff]
          %v732 = vld [vmem:[%s0 + $0x38] sm:$0xff]
          %v733 = vld [vmem:[%s0 + $0x40] sm:$0xff]
          %v734 = vld [vmem:[%s0 + $0x48] sm:$0xff]
          %v735 = vld [vmem:[%s0 + $0x50] sm:$0xff]
          %v736 = vld [vmem:[%s0 + $0x58] sm:$0xff]
          %v737 = vld [vmem:[%s0 + $0x60] sm:$0xff]
          %v738 = vld [vmem:[%s0 + $0x68] sm:$0xff]
          %v739 = vld [vmem:[%s0 + $0x70] sm:$0xff]
          %v740 = vld [vmem:[%s0 + $0x78] sm:$0xff]
          %vm741 = vcmp.ge.f32.partialorder %v725, 0.0
          %vm742 = vcmp.ge.f32.partialorder %v726, 0.0
          %vm743 = vcmp.ge.f32.partialorder %v727, 0.0
          %vm744 = vcmp.ge.f32.partialorder %v728, 0.0
          %vm745 = vcmp.ge.f32.partialorder %v729, 0.0
          %vm746 = vcmp.ge.f32.partialorder %v730, 0.0
          %vm747 = vcmp.ge.f32.partialorder %v731, 0.0
          %vm748 = vcmp.ge.f32.partialorder %v732, 0.0
          %vm749 = vcmp.ge.f32.partialorder %v733, 0.0
          %vm750 = vcmp.ge.f32.partialorder %v734, 0.0
          %vm751 = vcmp.ge.f32.partialorder %v735, 0.0
          %vm752 = vcmp.ge.f32.partialorder %v736, 0.0
          %vm753 = vcmp.ge.f32.partialorder %v737, 0.0
          %vm754 = vcmp.ge.f32.partialorder %v738, 0.0
          %vm755 = vcmp.ge.f32.partialorder %v739, 0.0
          %vm756 = vcmp.ge.f32.partialorder %v740, 0.0
          %v757 = vmul.f32 %v725, 0.2
          %v758 = vmul.f32 %v726, 0.2
          %v759 = vmul.f32 %v727, 0.2
          %v760 = vmul.f32 %v728, 0.2
          %v761 = vmul.f32 %v729, 0.2
          %v762 = vmul.f32 %v730, 0.2
          %v763 = vmul.f32 %v731, 0.2
          %v764 = vmul.f32 %v732, 0.2
          %v765 = vmul.f32 %v733, 0.2
          %v766 = vmul.f32 %v734, 0.2
          %v767 = vmul.f32 %v735, 0.2
          %v768 = vmul.f32 %v736, 0.2
          %v769 = vmul.f32 %v737, 0.2
          %v770 = vmul.f32 %v738, 0.2
          %v771 = vmul.f32 %v739, 0.2
          %v772 = vmul.f32 %v740, 0.2
          %v773 = vsel %vm741, %v725, %v757
          %v774 = vsel %vm742, %v726, %v758
          %v775 = vsel %vm743, %v727, %v759
          %v776 = vsel %vm744, %v728, %v760
          %v777 = vsel %vm745, %v729, %v761
          %v778 = vsel %vm746, %v730, %v762
          %v779 = vsel %vm747, %v731, %v763
          %v780 = vsel %vm748, %v732, %v764
          %v781 = vsel %vm749, %v733, %v765
          %v782 = vsel %vm750, %v734, %v766
          %v783 = vsel %vm751, %v735, %v767
          %v784 = vsel %vm752, %v736, %v768
          %v785 = vsel %vm753, %v737, %v769
          %v786 = vsel %vm754, %v738, %v770
          %v787 = vsel %vm755, %v739, %v771
          %v788 = vsel %vm756, %v740, %v772
          %v789 = vld [vmem:[#allocation10] sm:$0xff]
          %v790 = vld [vmem:[#allocation10 + $0x8] sm:$0xff]
          %v791 = vld [vmem:[#allocation10 + $0x10] sm:$0xff]
          %v792 = vld [vmem:[#allocation10 + $0x18] sm:$0xff]
          %v793 = vld [vmem:[#allocation10 + $0x20] sm:$0xff]
          %v794 = vld [vmem:[#allocation10 + $0x28] sm:$0xff]
          %v795 = vld [vmem:[#allocation10 + $0x30] sm:$0xff]
          %v796 = vld [vmem:[#allocation10 + $0x38] sm:$0xff]
          %v797 = vld [vmem:[#allocation10 + $0x40] sm:$0xff]
          %v798 = vld [vmem:[#allocation10 + $0x48] sm:$0xff]
          %v799 = vld [vmem:[#allocation10 + $0x50] sm:$0xff]
          %v800 = vld [vmem:[#allocation10 + $0x58] sm:$0xff]
          %v801 = vld [vmem:[#allocation10 + $0x60] sm:$0xff]
          %v802 = vld [vmem:[#allocation10 + $0x68] sm:$0xff]
          %v803 = vld [vmem:[#allocation10 + $0x70] sm:$0xff]
          %v804 = vld [vmem:[#allocation10 + $0x78] sm:$0xff]
          %v805 = vld [vmem:[%s6] sm:$0x1]
          %v807 = vperm.slane %v805, 0
          %809 = vmatpush.msra.mxu0 %v804
          %810 = vmatpush.msra.mxu0 %v803
          %811 = vmatpush.msra.mxu0 %v802
          %812 = vmatpush.msra.mxu0 %v801
          %813 = vmatpush.msra.mxu0 %v800
          %814 = vmatpush.msra.mxu0 %v799
          %815 = vmatpush.msra.mxu0 %v798
          %816 = vmatpush.msra.mxu0 %v797
          %817 = vmatpush.msra.mxu0 %v796
          %818 = vmatpush.msra.mxu0 %v795
          %819 = vmatpush.msra.mxu0 %v794
          %820 = vmatpush.msra.mxu0 %v793
          %821 = vmatpush.msra.mxu0 %v792
          %822 = vmatpush.msra.mxu0 %v791
          %823 = vmatpush.msra.mxu0 %v790
          %824 = vmatpush.msra.mxu0 %v789
          %825 = vmatmul.f32.gmra.mxu0 %v773
          %v826 = vpop.f32.mrf.mxu0
          %v827 = vadd.f32 %v807, %v826
          %828 = vmatmul.f32.gmra.mxu0 %v774
          %v829 = vpop.f32.mrf.mxu0
          %v830 = vadd.f32 %v807, %v829
          %831 = vmatmul.f32.gmra.mxu0 %v775
          %v832 = vpop.f32.mrf.mxu0
          %v833 = vadd.f32 %v807, %v832
          %834 = vmatmul.f32.gmra.mxu0 %v776
          %v835 = vpop.f32.mrf.mxu0
          %v836 = vadd.f32 %v807, %v835
          %837 = vmatmul.f32.gmra.mxu0 %v777
          %v838 = vpop.f32.mrf.mxu0
          %v839 = vadd.f32 %v807, %v838
          %840 = vmatmul.f32.gmra.mxu0 %v778
          %v841 = vpop.f32.mrf.mxu0
          %v842 = vadd.f32 %v807, %v841
          %843 = vmatmul.f32.gmra.mxu0 %v779
          %v844 = vpop.f32.mrf.mxu0
          %v845 = vadd.f32 %v807, %v844
          %846 = vmatmul.f32.gmra.mxu0 %v780
          %v847 = vpop.f32.mrf.mxu0
          %v848 = vadd.f32 %v807, %v847
          %849 = vmatmul.f32.gmra.mxu0 %v781
          %v850 = vpop.f32.mrf.mxu0
          %v851 = vadd.f32 %v807, %v850
          %852 = vmatmul.f32.gmra.mxu0 %v782
          %v853 = vpop.f32.mrf.mxu0
          %v854 = vadd.f32 %v807, %v853
          %855 = vmatmul.f32.gmra.mxu0 %v783
          %v856 = vpop.f32.mrf.mxu0
          %v857 = vadd.f32 %v807, %v856
          %858 = vmatmul.f32.gmra.mxu0 %v784
          %v859 = vpop.f32.mrf.mxu0
          %v860 = vadd.f32 %v807, %v859
          %861 = vmatmul.f32.gmra.mxu0 %v785
          %v862 = vpop.f32.mrf.mxu0
          %v863 = vadd.f32 %v807, %v862
          %864 = vmatmul.f32.gmra.mxu0 %v786
          %v865 = vpop.f32.mrf.mxu0
          %v866 = vadd.f32 %v807, %v865
          %867 = vmatmul.f32.gmra.mxu0 %v787
          %v868 = vpop.f32.mrf.mxu0
          %v869 = vadd.f32 %v807, %v868
          %870 = vmatmul.f32.gmra.mxu0 %v788
          %v871 = vpop.f32.mrf.mxu0
          %v872 = vadd.f32 %v807, %v871
          %873 = vdwg.mxu0
          %vm874 = vcmp.ge.f32.partialorder %v827, 0.0
          %vm875 = vcmp.ge.f32.partialorder %v830, 0.0
          %vm876 = vcmp.ge.f32.partialorder %v833, 0.0
          %vm877 = vcmp.ge.f32.partialorder %v836, 0.0
          %vm878 = vcmp.ge.f32.partialorder %v839, 0.0
          %vm879 = vcmp.ge.f32.partialorder %v842, 0.0
          %vm880 = vcmp.ge.f32.partialorder %v845, 0.0
          %vm881 = vcmp.ge.f32.partialorder %v848, 0.0
          %vm882 = vcmp.ge.f32.partialorder %v851, 0.0
          %vm883 = vcmp.ge.f32.partialorder %v854, 0.0
          %vm884 = vcmp.ge.f32.partialorder %v857, 0.0
          %vm885 = vcmp.ge.f32.partialorder %v860, 0.0
          %vm886 = vcmp.ge.f32.partialorder %v863, 0.0
          %vm887 = vcmp.ge.f32.partialorder %v866, 0.0
          %vm888 = vcmp.ge.f32.partialorder %v869, 0.0
          %vm889 = vcmp.ge.f32.partialorder %v872, 0.0
          %v890 = vmul.f32 %v827, 0.2
          %v891 = vmul.f32 %v830, 0.2
          %v892 = vmul.f32 %v833, 0.2
          %v893 = vmul.f32 %v836, 0.2
          %v894 = vmul.f32 %v839, 0.2
          %v895 = vmul.f32 %v842, 0.2
          %v896 = vmul.f32 %v845, 0.2
          %v897 = vmul.f32 %v848, 0.2
          %v898 = vmul.f32 %v851, 0.2
          %v899 = vmul.f32 %v854, 0.2
          %v900 = vmul.f32 %v857, 0.2
          %v901 = vmul.f32 %v860, 0.2
          %v902 = vmul.f32 %v863, 0.2
          %v903 = vmul.f32 %v866, 0.2
          %v904 = vmul.f32 %v869, 0.2
          %v905 = vmul.f32 %v872, 0.2
          %v906 = vsel %vm874, %v827, %v890
          %v907 = vsel %vm875, %v830, %v891
          %v908 = vsel %vm876, %v833, %v892
          %v909 = vsel %vm877, %v836, %v893
          %v910 = vsel %vm878, %v839, %v894
          %v911 = vsel %vm879, %v842, %v895
          %v912 = vsel %vm880, %v845, %v896
          %v913 = vsel %vm881, %v848, %v897
          %v914 = vsel %vm882, %v851, %v898
          %v915 = vsel %vm883, %v854, %v899
          %v916 = vsel %vm884, %v857, %v900
          %v917 = vsel %vm885, %v860, %v901
          %v918 = vsel %vm886, %v863, %v902
          %v919 = vsel %vm887, %v866, %v903
          %v920 = vsel %vm888, %v869, %v904
          %v921 = vsel %vm889, %v872, %v905
          %v922 = vld [vmem:[#allocation12] sm:$0xff]
          %v923 = vld [vmem:[#allocation12 + $0x8] sm:$0xff]
          %v924 = vld [vmem:[#allocation12 + $0x10] sm:$0xff]
          %v925 = vld [vmem:[#allocation12 + $0x18] sm:$0xff]
          %v926 = vld [vmem:[#allocation12 + $0x20] sm:$0xff]
          %v927 = vld [vmem:[#allocation12 + $0x28] sm:$0xff]
          %v928 = vld [vmem:[#allocation12 + $0x30] sm:$0xff]
          %v929 = vld [vmem:[#allocation12 + $0x38] sm:$0xff]
          %v930 = vld [vmem:[#allocation12 + $0x40] sm:$0xff]
          %v931 = vld [vmem:[#allocation12 + $0x48] sm:$0xff]
          %v932 = vld [vmem:[#allocation12 + $0x50] sm:$0xff]
          %v933 = vld [vmem:[#allocation12 + $0x58] sm:$0xff]
          %v934 = vld [vmem:[#allocation12 + $0x60] sm:$0xff]
          %v935 = vld [vmem:[#allocation12 + $0x68] sm:$0xff]
          %v936 = vld [vmem:[#allocation12 + $0x70] sm:$0xff]
          %v937 = vld [vmem:[#allocation12 + $0x78] sm:$0xff]
          %v938 = vld [vmem:[%s8] sm:$0x1]
          %v940 = vperm.slane %v938, 0
          %942 = vmatpush.msra.mxu0 %v937
          %943 = vmatpush.msra.mxu0 %v936
          %944 = vmatpush.msra.mxu0 %v935
          %945 = vmatpush.msra.mxu0 %v934
          %946 = vmatpush.msra.mxu0 %v933
          %947 = vmatpush.msra.mxu0 %v932
          %948 = vmatpush.msra.mxu0 %v931
          %949 = vmatpush.msra.mxu0 %v930
          %950 = vmatpush.msra.mxu0 %v929
          %951 = vmatpush.msra.mxu0 %v928
          %952 = vmatpush.msra.mxu0 %v927
          %953 = vmatpush.msra.mxu0 %v926
          %954 = vmatpush.msra.mxu0 %v925
          %955 = vmatpush.msra.mxu0 %v924
          %956 = vmatpush.msra.mxu0 %v923
          %957 = vmatpush.msra.mxu0 %v922
          %958 = vmatmul.f32.gmra.mxu0 %v906
          %v959 = vpop.f32.mrf.mxu0
          %v960 = vadd.f32 %v940, %v959
          %961 = vmatmul.f32.gmra.mxu0 %v907
          %v962 = vpop.f32.mrf.mxu0
          %v963 = vadd.f32 %v940, %v962
          %964 = vmatmul.f32.gmra.mxu0 %v908
          %v965 = vpop.f32.mrf.mxu0
          %v966 = vadd.f32 %v940, %v965
          %967 = vmatmul.f32.gmra.mxu0 %v909
          %v968 = vpop.f32.mrf.mxu0
          %v969 = vadd.f32 %v940, %v968
          %970 = vmatmul.f32.gmra.mxu0 %v910
          %v971 = vpop.f32.mrf.mxu0
          %v972 = vadd.f32 %v940, %v971
          %973 = vmatmul.f32.gmra.mxu0 %v911
          %v974 = vpop.f32.mrf.mxu0
          %v975 = vadd.f32 %v940, %v974
          %976 = vmatmul.f32.gmra.mxu0 %v912
          %v977 = vpop.f32.mrf.mxu0
          %v978 = vadd.f32 %v940, %v977
          %979 = vmatmul.f32.gmra.mxu0 %v913
          %v980 = vpop.f32.mrf.mxu0
          %v981 = vadd.f32 %v940, %v980
          %982 = vmatmul.f32.gmra.mxu0 %v914
          %v983 = vpop.f32.mrf.mxu0
          %v984 = vadd.f32 %v940, %v983
          %985 = vmatmul.f32.gmra.mxu0 %v915
          %v986 = vpop.f32.mrf.mxu0
          %v987 = vadd.f32 %v940, %v986
          %988 = vmatmul.f32.gmra.mxu0 %v916
          %v989 = vpop.f32.mrf.mxu0
          %v990 = vadd.f32 %v940, %v989
          %991 = vmatmul.f32.gmra.mxu0 %v917
          %v992 = vpop.f32.mrf.mxu0
          %v993 = vadd.f32 %v940, %v992
          %994 = vmatmul.f32.gmra.mxu0 %v918
          %v995 = vpop.f32.mrf.mxu0
          %v996 = vadd.f32 %v940, %v995
          %997 = vmatmul.f32.gmra.mxu0 %v919
          %v998 = vpop.f32.mrf.mxu0
          %v999 = vadd.f32 %v940, %v998
          %1000 = vmatmul.f32.gmra.mxu0 %v920
          %v1001 = vpop.f32.mrf.mxu0
          %v1002 = vadd.f32 %v940, %v1001
          %1003 = vmatmul.f32.gmra.mxu0 %v921
          %v1004 = vpop.f32.mrf.mxu0
          %v1005 = vadd.f32 %v940, %v1004
          %1006 = vdwg.mxu0
          %1007 = vst [vmem:[#allocation2] sm:$0xff] %v960
          %1008 = vst [vmem:[#allocation2 + $0x8] sm:$0xff] %v963
          %1009 = vst [vmem:[#allocation2 + $0x10] sm:$0xff] %v966
          %1010 = vst [vmem:[#allocation2 + $0x18] sm:$0xff] %v969
          %1011 = vst [vmem:[#allocation2 + $0x20] sm:$0xff] %v972
          %1012 = vst [vmem:[#allocation2 + $0x28] sm:$0xff] %v975
          %1013 = vst [vmem:[#allocation2 + $0x30] sm:$0xff] %v978
          %1014 = vst [vmem:[#allocation2 + $0x38] sm:$0xff] %v981
          %1015 = vst [vmem:[#allocation2 + $0x40] sm:$0xff] %v984
          %1016 = vst [vmem:[#allocation2 + $0x48] sm:$0xff] %v987
          %1017 = vst [vmem:[#allocation2 + $0x50] sm:$0xff] %v990
          %1018 = vst [vmem:[#allocation2 + $0x58] sm:$0xff] %v993
          %1019 = vst [vmem:[#allocation2 + $0x60] sm:$0xff] %v996
          %1020 = vst [vmem:[#allocation2 + $0x68] sm:$0xff] %v999
          %1021 = vst [vmem:[#allocation2 + $0x70] sm:$0xff] %v1002
          %1022 = vst [vmem:[#allocation2 + $0x78] sm:$0xff] %v1005
          %1023 = vst [vmem:[#allocation3] sm:$0xff] 0.0
          %1024 = vst [vmem:[#allocation3 + $0x8] sm:$0xff] 0.0
          %1025 = vst [vmem:[#allocation3 + $0x10] sm:$0xff] 0.0
          %1026 = vst [vmem:[#allocation3 + $0x18] sm:$0xff] 0.0
          %1027 = vst [vmem:[#allocation3 + $0x20] sm:$0xff] 0.0
          %1028 = vst [vmem:[#allocation3 + $0x28] sm:$0xff] 0.0
          %1029 = vst [vmem:[#allocation3 + $0x30] sm:$0xff] 0.0
          %1030 = vst [vmem:[#allocation3 + $0x38] sm:$0xff] 0.0
        $region116: #{tpu_custom_call.1} parent=79 // pred_fallthru
          _
        %v1031 = vld [vmem:[%s603] sm:$0xff]
        %v1032 = vld [vmem:[%s603 + $0x8] sm:$0xff]
        %v1033 = vld [vmem:[%s603 + $0x10] sm:$0xff]
        %v1034 = vld [vmem:[%s603 + $0x18] sm:$0xff]
        %v1035 = vld [vmem:[%s603 + $0x20] sm:$0xff]
        %v1036 = vld [vmem:[%s603 + $0x28] sm:$0xff]
        %v1037 = vld [vmem:[%s603 + $0x30] sm:$0xff]
        %v1038 = vld [vmem:[%s603 + $0x38] sm:$0xff]
        %v1039 = vld [vmem:[%s603 + $0x40] sm:$0xff]
        %v1040 = vld [vmem:[%s603 + $0x48] sm:$0xff]
        %v1041 = vld [vmem:[%s603 + $0x50] sm:$0xff]
        %v1042 = vld [vmem:[%s603 + $0x58] sm:$0xff]
        %v1043 = vld [vmem:[%s603 + $0x60] sm:$0xff]
        %v1044 = vld [vmem:[%s603 + $0x68] sm:$0xff]
        %v1045 = vld [vmem:[%s603 + $0x70] sm:$0xff]
        %v1046 = vld [vmem:[%s603 + $0x78] sm:$0xff]
        %v1047 = vld [vmem:[#allocation13] sm:$0xff]
        %v1048 = vld [vmem:[#allocation13 + $0x8] sm:$0xff]
        %v1049 = vld [vmem:[#allocation13 + $0x10] sm:$0xff]
        %v1050 = vld [vmem:[#allocation13 + $0x18] sm:$0xff]
        %v1051 = vld [vmem:[#allocation13 + $0x20] sm:$0xff]
        %v1052 = vld [vmem:[#allocation13 + $0x28] sm:$0xff]
        %v1053 = vld [vmem:[#allocation13 + $0x30] sm:$0xff]
        %v1054 = vld [vmem:[#allocation13 + $0x38] sm:$0xff]
        %v1055 = vld [vmem:[#allocation13 + $0x40] sm:$0xff]
        %v1056 = vld [vmem:[#allocation13 + $0x48] sm:$0xff]
        %v1057 = vld [vmem:[#allocation13 + $0x50] sm:$0xff]
        %v1058 = vld [vmem:[#allocation13 + $0x58] sm:$0xff]
        %v1059 = vld [vmem:[#allocation13 + $0x60] sm:$0xff]
        %v1060 = vld [vmem:[#allocation13 + $0x68] sm:$0xff]
        %v1061 = vld [vmem:[#allocation13 + $0x70] sm:$0xff]
        %v1062 = vld [vmem:[#allocation13 + $0x78] sm:$0xff]
        %v1063 = vld [vmem:[%s10] sm:$0x1]
        %v1065 = vperm.slane %v1063, 0
        %1067 = vmatpush.msra.mxu0 %v1062
        %1068 = vmatpush.msra.mxu0 %v1061
        %1069 = vmatpush.msra.mxu0 %v1060
        %1070 = vmatpush.msra.mxu0 %v1059
        %1071 = vmatpush.msra.mxu0 %v1058
        %1072 = vmatpush.msra.mxu0 %v1057
        %1073 = vmatpush.msra.mxu0 %v1056
        %1074 = vmatpush.msra.mxu0 %v1055
        %1075 = vmatpush.msra.mxu0 %v1054
        %1076 = vmatpush.msra.mxu0 %v1053
        %1077 = vmatpush.msra.mxu0 %v1052
        %1078 = vmatpush.msra.mxu0 %v1051
        %1079 = vmatpush.msra.mxu0 %v1050
        %1080 = vmatpush.msra.mxu0 %v1049
        %1081 = vmatpush.msra.mxu0 %v1048
        %1082 = vmatpush.msra.mxu0 %v1047
        %1083 = vmatmul.f32.gmra.mxu0 %v1031
        %v1084 = vpop.f32.mrf.mxu0
        %v1085 = vadd.f32 %v1065, %v1084
        %1086 = vmatmul.f32.gmra.mxu0 %v1032
        %v1087 = vpop.f32.mrf.mxu0
        %v1088 = vadd.f32 %v1065, %v1087
        %1089 = vmatmul.f32.gmra.mxu0 %v1033
        %v1090 = vpop.f32.mrf.mxu0
        %v1091 = vadd.f32 %v1065, %v1090
        %1092 = vmatmul.f32.gmra.mxu0 %v1034
        %v1093 = vpop.f32.mrf.mxu0
        %v1094 = vadd.f32 %v1065, %v1093
        %1095 = vmatmul.f32.gmra.mxu0 %v1035
        %v1096 = vpop.f32.mrf.mxu0
        %v1097 = vadd.f32 %v1065, %v1096
        %1098 = vmatmul.f32.gmra.mxu0 %v1036
        %v1099 = vpop.f32.mrf.mxu0
        %v1100 = vadd.f32 %v1065, %v1099
        %1101 = vmatmul.f32.gmra.mxu0 %v1037
        %v1102 = vpop.f32.mrf.mxu0
        %v1103 = vadd.f32 %v1065, %v1102
        %1104 = vmatmul.f32.gmra.mxu0 %v1038
        %v1105 = vpop.f32.mrf.mxu0
        %v1106 = vadd.f32 %v1065, %v1105
        %1107 = vmatmul.f32.gmra.mxu0 %v1039
        %v1108 = vpop.f32.mrf.mxu0
        %v1109 = vadd.f32 %v1065, %v1108
        %1110 = vmatmul.f32.gmra.mxu0 %v1040
        %v1111 = vpop.f32.mrf.mxu0
        %v1112 = vadd.f32 %v1065, %v1111
        %1113 = vmatmul.f32.gmra.mxu0 %v1041
        %v1114 = vpop.f32.mrf.mxu0
        %v1115 = vadd.f32 %v1065, %v1114
        %1116 = vmatmul.f32.gmra.mxu0 %v1042
        %v1117 = vpop.f32.mrf.mxu0
        %v1118 = vadd.f32 %v1065, %v1117
        %1119 = vmatmul.f32.gmra.mxu0 %v1043
        %v1120 = vpop.f32.mrf.mxu0
        %v1121 = vadd.f32 %v1065, %v1120
        %1122 = vmatmul.f32.gmra.mxu0 %v1044
        %v1123 = vpop.f32.mrf.mxu0
        %v1124 = vadd.f32 %v1065, %v1123
        %1125 = vmatmul.f32.gmra.mxu0 %v1045
        %v1126 = vpop.f32.mrf.mxu0
        %v1127 = vadd.f32 %v1065, %v1126
        %1128 = vmatmul.f32.gmra.mxu0 %v1046
        %v1129 = vpop.f32.mrf.mxu0
        %v1130 = vadd.f32 %v1065, %v1129
        %1131 = vdwg.mxu0
        %v1132 = vmax.f32 %v1085, 0.0
        %v1133 = vmax.f32 %v1088, 0.0
        %v1134 = vmax.f32 %v1091, 0.0
        %v1135 = vmax.f32 %v1094, 0.0
        %v1136 = vmax.f32 %v1097, 0.0
        %v1137 = vmax.f32 %v1100, 0.0
        %v1138 = vmax.f32 %v1103, 0.0
        %v1139 = vmax.f32 %v1106, 0.0
        %v1140 = vmax.f32 %v1109, 0.0
        %v1141 = vmax.f32 %v1112, 0.0
        %v1142 = vmax.f32 %v1115, 0.0
        %v1143 = vmax.f32 %v1118, 0.0
        %v1144 = vmax.f32 %v1121, 0.0
        %v1145 = vmax.f32 %v1124, 0.0
        %v1146 = vmax.f32 %v1127, 0.0
        %v1147 = vmax.f32 %v1130, 0.0
        %v1148 = vld [vmem:[#allocation15] sm:$0xff]
        %v1149 = vld [vmem:[#allocation15 + $0x8] sm:$0xff]
        %v1150 = vld [vmem:[#allocation15 + $0x10] sm:$0xff]
        %v1151 = vld [vmem:[#allocation15 + $0x18] sm:$0xff]
        %v1152 = vld [vmem:[#allocation15 + $0x20] sm:$0xff]
        %v1153 = vld [vmem:[#allocation15 + $0x28] sm:$0xff]
        %v1154 = vld [vmem:[#allocation15 + $0x30] sm:$0xff]
        %v1155 = vld [vmem:[#allocation15 + $0x38] sm:$0xff]
        %v1156 = vld [vmem:[#allocation15 + $0x40] sm:$0xff]
        %v1157 = vld [vmem:[#allocation15 + $0x48] sm:$0xff]
        %v1158 = vld [vmem:[#allocation15 + $0x50] sm:$0xff]
        %v1159 = vld [vmem:[#allocation15 + $0x58] sm:$0xff]
        %v1160 = vld [vmem:[#allocation15 + $0x60] sm:$0xff]
        %v1161 = vld [vmem:[#allocation15 + $0x68] sm:$0xff]
        %v1162 = vld [vmem:[#allocation15 + $0x70] sm:$0xff]
        %v1163 = vld [vmem:[#allocation15 + $0x78] sm:$0xff]
        %v1164 = vld [vmem:[%s12] sm:$0x1]
        %v1166 = vperm.slane %v1164, 0
        %1168 = vmatpush.msra.mxu0 %v1163
        %1169 = vmatpush.msra.mxu0 %v1162
        %1170 = vmatpush.msra.mxu0 %v1161
        %1171 = vmatpush.msra.mxu0 %v1160
        %1172 = vmatpush.msra.mxu0 %v1159
        %1173 = vmatpush.msra.mxu0 %v1158
        %1174 = vmatpush.msra.mxu0 %v1157
        %1175 = vmatpush.msra.mxu0 %v1156
        %1176 = vmatpush.msra.mxu0 %v1155
        %1177 = vmatpush.msra.mxu0 %v1154
        %1178 = vmatpush.msra.mxu0 %v1153
        %1179 = vmatpush.msra.mxu0 %v1152
        %1180 = vmatpush.msra.mxu0 %v1151
        %1181 = vmatpush.msra.mxu0 %v1150
        %1182 = vmatpush.msra.mxu0 %v1149
        %1183 = vmatpush.msra.mxu0 %v1148
        %1184 = vmatmul.f32.gmra.mxu0 %v1132
        %v1185 = vpop.f32.mrf.mxu0
        %v1186 = vadd.f32 %v1166, %v1185
        %1187 = vmatmul.f32.gmra.mxu0 %v1133
        %v1188 = vpop.f32.mrf.mxu0
        %v1189 = vadd.f32 %v1166, %v1188
        %1190 = vmatmul.f32.gmra.mxu0 %v1134
        %v1191 = vpop.f32.mrf.mxu0
        %v1192 = vadd.f32 %v1166, %v1191
        %1193 = vmatmul.f32.gmra.mxu0 %v1135
        %v1194 = vpop.f32.mrf.mxu0
        %v1195 = vadd.f32 %v1166, %v1194
        %1196 = vmatmul.f32.gmra.mxu0 %v1136
        %v1197 = vpop.f32.mrf.mxu0
        %v1198 = vadd.f32 %v1166, %v1197
        %1199 = vmatmul.f32.gmra.mxu0 %v1137
        %v1200 = vpop.f32.mrf.mxu0
        %v1201 = vadd.f32 %v1166, %v1200
        %1202 = vmatmul.f32.gmra.mxu0 %v1138
        %v1203 = vpop.f32.mrf.mxu0
        %v1204 = vadd.f32 %v1166, %v1203
        %1205 = vmatmul.f32.gmra.mxu0 %v1139
        %v1206 = vpop.f32.mrf.mxu0
        %v1207 = vadd.f32 %v1166, %v1206
        %1208 = vmatmul.f32.gmra.mxu0 %v1140
        %v1209 = vpop.f32.mrf.mxu0
        %v1210 = vadd.f32 %v1166, %v1209
        %1211 = vmatmul.f32.gmra.mxu0 %v1141
        %v1212 = vpop.f32.mrf.mxu0
        %v1213 = vadd.f32 %v1166, %v1212
        %1214 = vmatmul.f32.gmra.mxu0 %v1142
        %v1215 = vpop.f32.mrf.mxu0
        %v1216 = vadd.f32 %v1166, %v1215
        %1217 = vmatmul.f32.gmra.mxu0 %v1143
        %v1218 = vpop.f32.mrf.mxu0
        %v1219 = vadd.f32 %v1166, %v1218
        %1220 = vmatmul.f32.gmra.mxu0 %v1144
        %v1221 = vpop.f32.mrf.mxu0
        %v1222 = vadd.f32 %v1166, %v1221
        %1223 = vmatmul.f32.gmra.mxu0 %v1145
        %v1224 = vpop.f32.mrf.mxu0
        %v1225 = vadd.f32 %v1166, %v1224
        %1226 = vmatmul.f32.gmra.mxu0 %v1146
        %v1227 = vpop.f32.mrf.mxu0
        %v1228 = vadd.f32 %v1166, %v1227
        %1229 = vmatmul.f32.gmra.mxu0 %v1147
        %v1230 = vpop.f32.mrf.mxu0
        %v1231 = vadd.f32 %v1166, %v1230
        %1232 = vdwg.mxu0
        %v1233 = vld [vmem:[#allocation16] sm:$0xff]
        %v1234 = vld [vmem:[#allocation16 + $0x8] sm:$0xff]
        %v1235 = vld [vmem:[#allocation16 + $0x10] sm:$0xff]
        %v1236 = vld [vmem:[#allocation16 + $0x18] sm:$0xff]
        %v1237 = vld [vmem:[#allocation16 + $0x20] sm:$0xff]
        %v1238 = vld [vmem:[#allocation16 + $0x28] sm:$0xff]
        %v1239 = vld [vmem:[#allocation16 + $0x30] sm:$0xff]
        %v1240 = vld [vmem:[#allocation16 + $0x38] sm:$0xff]
        %v1241 = vld [vmem:[#allocation16 + $0x40] sm:$0xff]
        %v1242 = vld [vmem:[#allocation16 + $0x48] sm:$0xff]
        %v1243 = vld [vmem:[#allocation16 + $0x50] sm:$0xff]
        %v1244 = vld [vmem:[#allocation16 + $0x58] sm:$0xff]
        %v1245 = vld [vmem:[#allocation16 + $0x60] sm:$0xff]
        %v1246 = vld [vmem:[#allocation16 + $0x68] sm:$0xff]
        %v1247 = vld [vmem:[#allocation16 + $0x70] sm:$0xff]
        %v1248 = vld [vmem:[#allocation16 + $0x78] sm:$0xff]
        %v1249 = vld [vmem:[#allocation16 + $0x80] sm:$0xff]
        %v1250 = vld [vmem:[#allocation16 + $0x88] sm:$0xff]
        %v1251 = vld [vmem:[#allocation16 + $0x90] sm:$0xff]
        %v1252 = vld [vmem:[#allocation16 + $0x98] sm:$0xff]
        %v1253 = vld [vmem:[#allocation16 + $0xa0] sm:$0xff]
        %v1254 = vld [vmem:[#allocation16 + $0xa8] sm:$0xff]
        %v1255 = vld [vmem:[#allocation16 + $0xb0] sm:$0xff]
        %v1256 = vld [vmem:[#allocation16 + $0xb8] sm:$0xff]
        %v1257 = vld [vmem:[#allocation16 + $0xc0] sm:$0xff]
        %v1258 = vld [vmem:[#allocation16 + $0xc8] sm:$0xff]
        %v1259 = vld [vmem:[#allocation16 + $0xd0] sm:$0xff]
        %v1260 = vld [vmem:[#allocation16 + $0xd8] sm:$0xff]
        %v1261 = vld [vmem:[#allocation16 + $0xe0] sm:$0xff]
        %v1262 = vld [vmem:[#allocation16 + $0xe8] sm:$0xff]
        %v1263 = vld [vmem:[#allocation16 + $0xf0] sm:$0xff]
        %v1264 = vld [vmem:[#allocation16 + $0xf8] sm:$0xff]
        %v1265 = vld [vmem:[%s14] sm:$0x3]
        %v1267 = vperm.slane %v1265, 0
        %v1268 = vperm.slane %v1265, 1
        %1271 = vmatpush.msra.mxu0 %v1263
        %1272 = vmatpush.msra.mxu0 %v1261
        %1273 = vmatpush.msra.mxu0 %v1259
        %1274 = vmatpush.msra.mxu0 %v1257
        %1275 = vmatpush.msra.mxu0 %v1255
        %1276 = vmatpush.msra.mxu0 %v1253
        %1277 = vmatpush.msra.mxu0 %v1251
        %1278 = vmatpush.msra.mxu0 %v1249
        %1279 = vmatpush.msra.mxu0 %v1247
        %1280 = vmatpush.msra.mxu0 %v1245
        %1281 = vmatpush.msra.mxu0 %v1243
        %1282 = vmatpush.msra.mxu0 %v1241
        %1283 = vmatpush.msra.mxu0 %v1239
        %1284 = vmatpush.msra.mxu0 %v1237
        %1285 = vmatpush.msra.mxu0 %v1235
        %1286 = vmatpush.msra.mxu0 %v1233
        %1287 = vmatmul.f32.gmra.mxu0 %v1186
        %v1288 = vpop.f32.mrf.mxu0
        %v1289 = vadd.f32 %v1267, %v1288
        %1290 = vmatmul.f32.gmra.mxu0 %v1189
        %v1291 = vpop.f32.mrf.mxu0
        %v1292 = vadd.f32 %v1267, %v1291
        %1293 = vmatmul.f32.gmra.mxu0 %v1192
        %v1294 = vpop.f32.mrf.mxu0
        %v1295 = vadd.f32 %v1267, %v1294
        %1296 = vmatmul.f32.gmra.mxu0 %v1195
        %v1297 = vpop.f32.mrf.mxu0
        %v1298 = vadd.f32 %v1267, %v1297
        %1299 = vmatmul.f32.gmra.mxu0 %v1198
        %v1300 = vpop.f32.mrf.mxu0
        %v1301 = vadd.f32 %v1267, %v1300
        %1302 = vmatmul.f32.gmra.mxu0 %v1201
        %v1303 = vpop.f32.mrf.mxu0
        %v1304 = vadd.f32 %v1267, %v1303
        %1305 = vmatmul.f32.gmra.mxu0 %v1204
        %v1306 = vpop.f32.mrf.mxu0
        %v1307 = vadd.f32 %v1267, %v1306
        %1308 = vmatmul.f32.gmra.mxu0 %v1207
        %v1309 = vpop.f32.mrf.mxu0
        %v1310 = vadd.f32 %v1267, %v1309
        %1311 = vmatmul.f32.gmra.mxu0 %v1210
        %v1312 = vpop.f32.mrf.mxu0
        %v1313 = vadd.f32 %v1267, %v1312
        %1314 = vmatmul.f32.gmra.mxu0 %v1213
        %v1315 = vpop.f32.mrf.mxu0
        %v1316 = vadd.f32 %v1267, %v1315
        %1317 = vmatmul.f32.gmra.mxu0 %v1216
        %v1318 = vpop.f32.mrf.mxu0
        %v1319 = vadd.f32 %v1267, %v1318
        %1320 = vmatmul.f32.gmra.mxu0 %v1219
        %v1321 = vpop.f32.mrf.mxu0
        %v1322 = vadd.f32 %v1267, %v1321
        %1323 = vmatmul.f32.gmra.mxu0 %v1222
        %v1324 = vpop.f32.mrf.mxu0
        %v1325 = vadd.f32 %v1267, %v1324
        %1326 = vmatmul.f32.gmra.mxu0 %v1225
        %v1327 = vpop.f32.mrf.mxu0
        %v1328 = vadd.f32 %v1267, %v1327
        %1329 = vmatmul.f32.gmra.mxu0 %v1228
        %v1330 = vpop.f32.mrf.mxu0
        %v1331 = vadd.f32 %v1267, %v1330
        %1332 = vmatmul.f32.gmra.mxu0 %v1231
        %v1333 = vpop.f32.mrf.mxu0
        %v1334 = vadd.f32 %v1267, %v1333
        %1335 = vdwg.mxu0
        %1336 = vmatpush.msra.mxu0 %v1264
        %1337 = vmatpush.msra.mxu0 %v1262
        %1338 = vmatpush.msra.mxu0 %v1260
        %1339 = vmatpush.msra.mxu0 %v1258
        %1340 = vmatpush.msra.mxu0 %v1256
        %1341 = vmatpush.msra.mxu0 %v1254
        %1342 = vmatpush.msra.mxu0 %v1252
        %1343 = vmatpush.msra.mxu0 %v1250
        %1344 = vmatpush.msra.mxu0 %v1248
        %1345 = vmatpush.msra.mxu0 %v1246
        %1346 = vmatpush.msra.mxu0 %v1244
        %1347 = vmatpush.msra.mxu0 %v1242
        %1348 = vmatpush.msra.mxu0 %v1240
        %1349 = vmatpush.msra.mxu0 %v1238
        %1350 = vmatpush.msra.mxu0 %v1236
        %1351 = vmatpush.msra.mxu0 %v1234
        %1352 = vmatmul.f32.gmra.mxu0 %v1186
        %v1353 = vpop.f32.mrf.mxu0
        %v1354 = vadd.f32 %v1268, %v1353
        %1355 = vmatmul.f32.gmra.mxu0 %v1189
        %v1356 = vpop.f32.mrf.mxu0
        %v1357 = vadd.f32 %v1268, %v1356
        %1358 = vmatmul.f32.gmra.mxu0 %v1192
        %v1359 = vpop.f32.mrf.mxu0
        %v1360 = vadd.f32 %v1268, %v1359
        %1361 = vmatmul.f32.gmra.mxu0 %v1195
        %v1362 = vpop.f32.mrf.mxu0
        %v1363 = vadd.f32 %v1268, %v1362
        %1364 = vmatmul.f32.gmra.mxu0 %v1198
        %v1365 = vpop.f32.mrf.mxu0
        %v1366 = vadd.f32 %v1268, %v1365
        %1367 = vmatmul.f32.gmra.mxu0 %v1201
        %v1368 = vpop.f32.mrf.mxu0
        %v1369 = vadd.f32 %v1268, %v1368
        %1370 = vmatmul.f32.gmra.mxu0 %v1204
        %v1371 = vpop.f32.mrf.mxu0
        %v1372 = vadd.f32 %v1268, %v1371
        %1373 = vmatmul.f32.gmra.mxu0 %v1207
        %v1374 = vpop.f32.mrf.mxu0
        %v1375 = vadd.f32 %v1268, %v1374
        %1376 = vmatmul.f32.gmra.mxu0 %v1210
        %v1377 = vpop.f32.mrf.mxu0
        %v1378 = vadd.f32 %v1268, %v1377
        %1379 = vmatmul.f32.gmra.mxu0 %v1213
        %v1380 = vpop.f32.mrf.mxu0
        %v1381 = vadd.f32 %v1268, %v1380
        %1382 = vmatmul.f32.gmra.mxu0 %v1216
        %v1383 = vpop.f32.mrf.mxu0
        %v1384 = vadd.f32 %v1268, %v1383
        %1385 = vmatmul.f32.gmra.mxu0 %v1219
        %v1386 = vpop.f32.mrf.mxu0
        %v1387 = vadd.f32 %v1268, %v1386
        %1388 = vmatmul.f32.gmra.mxu0 %v1222
        %v1389 = vpop.f32.mrf.mxu0
        %v1390 = vadd.f32 %v1268, %v1389
        %1391 = vmatmul.f32.gmra.mxu0 %v1225
        %v1392 = vpop.f32.mrf.mxu0
        %v1393 = vadd.f32 %v1268, %v1392
        %1394 = vmatmul.f32.gmra.mxu0 %v1228
        %v1395 = vpop.f32.mrf.mxu0
        %v1396 = vadd.f32 %v1268, %v1395
        %1397 = vmatmul.f32.gmra.mxu0 %v1231
        %v1398 = vpop.f32.mrf.mxu0
        %v1399 = vadd.f32 %v1268, %v1398
        %1400 = vdwg.mxu0
        %v1401 = vxor.u32 %v1289, 2147483648
        %v1402 = vxor.u32 %v1292, 2147483648
        %v1403 = vxor.u32 %v1295, 2147483648
        %v1404 = vxor.u32 %v1298, 2147483648
        %v1405 = vxor.u32 %v1301, 2147483648
        %v1406 = vxor.u32 %v1304, 2147483648
        %v1407 = vxor.u32 %v1307, 2147483648
        %v1408 = vxor.u32 %v1310, 2147483648
        %v1409 = vxor.u32 %v1313, 2147483648
        %v1410 = vxor.u32 %v1316, 2147483648
        %v1411 = vxor.u32 %v1319, 2147483648
        %v1412 = vxor.u32 %v1322, 2147483648
        %v1413 = vxor.u32 %v1325, 2147483648
        %v1414 = vxor.u32 %v1328, 2147483648
        %v1415 = vxor.u32 %v1331, 2147483648
        %v1416 = vxor.u32 %v1334, 2147483648
        %v1417 = vmul.f32 %v1401, 1.442695
        %v1418 = vpow.pop %v1417
        %v1419 = vmul.f32 %v1402, 1.442695
        %v1420 = vpow.pop %v1419
        %v1421 = vmul.f32 %v1403, 1.442695
        %v1422 = vpow.pop %v1421
        %v1423 = vmul.f32 %v1404, 1.442695
        %v1424 = vpow.pop %v1423
        %v1425 = vmul.f32 %v1405, 1.442695
        %v1426 = vpow.pop %v1425
        %v1427 = vmul.f32 %v1406, 1.442695
        %v1428 = vpow.pop %v1427
        %v1429 = vmul.f32 %v1407, 1.442695
        %v1430 = vpow.pop %v1429
        %v1431 = vmul.f32 %v1408, 1.442695
        %v1432 = vpow.pop %v1431
        %v1433 = vmul.f32 %v1409, 1.442695
        %v1434 = vpow.pop %v1433
        %v1435 = vmul.f32 %v1410, 1.442695
        %v1436 = vpow.pop %v1435
        %v1437 = vmul.f32 %v1411, 1.442695
        %v1438 = vpow.pop %v1437
        %v1439 = vmul.f32 %v1412, 1.442695
        %v1440 = vpow.pop %v1439
        %v1441 = vmul.f32 %v1413, 1.442695
        %v1442 = vpow.pop %v1441
        %v1443 = vmul.f32 %v1414, 1.442695
        %v1444 = vpow.pop %v1443
        %v1445 = vmul.f32 %v1415, 1.442695
        %v1446 = vpow.pop %v1445
        %v1447 = vmul.f32 %v1416, 1.442695
        %v1448 = vpow.pop %v1447
        %v1449 = vadd.f32 %v1418, 1.0
        %v1450 = vadd.f32 %v1420, 1.0
        %v1451 = vadd.f32 %v1422, 1.0
        %v1452 = vadd.f32 %v1424, 1.0
        %v1453 = vadd.f32 %v1426, 1.0
        %v1454 = vadd.f32 %v1428, 1.0
        %v1455 = vadd.f32 %v1430, 1.0
        %v1456 = vadd.f32 %v1432, 1.0
        %v1457 = vadd.f32 %v1434, 1.0
        %v1458 = vadd.f32 %v1436, 1.0
        %v1459 = vadd.f32 %v1438, 1.0
        %v1460 = vadd.f32 %v1440, 1.0
        %v1461 = vadd.f32 %v1442, 1.0
        %v1462 = vadd.f32 %v1444, 1.0
        %v1463 = vadd.f32 %v1446, 1.0
        %v1464 = vadd.f32 %v1448, 1.0
        %v1465 = vrcp.pop %v1449
        %v1466 = vmul.f32 %v1449, %v1465
        %v1467 = vsub.f32 1.0, %v1466
        %v1468 = vmul.f32 %v1465, %v1467
        %v1469 = vadd.f32 %v1465, %v1468
        %vm1470 = vweird.f32 %v1449
        %vm1471 = vweird.f32 %v1465
        %vm1472 = vmor %vm1470, %vm1471
        %v1473 = vsel %vm1472, %v1465, %v1469
        %v1474 = vand.u32 2147483647, %v1449
        %vm1475 = vcmp.eq.f32.partialorder %v1474, 8.507059e+37
        %v1476 = vand.u32 %v1449, 2147483648
        %v1477 = vor.u32 1.1754944e-38, %v1476
        %v1478 = vsel %vm1475, %v1477, %v1473
        %v1479 = vmul.f32 1.0, %v1478
        %v1480 = vrcp.pop %v1450
        %v1481 = vmul.f32 %v1450, %v1480
        %v1482 = vsub.f32 1.0, %v1481
        %v1483 = vmul.f32 %v1480, %v1482
        %v1484 = vadd.f32 %v1480, %v1483
        %vm1485 = vweird.f32 %v1450
        %vm1486 = vweird.f32 %v1480
        %vm1487 = vmor %vm1485, %vm1486
        %v1488 = vsel %vm1487, %v1480, %v1484
        %v1489 = vand.u32 2147483647, %v1450
        %vm1490 = vcmp.eq.f32.partialorder %v1489, 8.507059e+37
        %v1491 = vand.u32 %v1450, 2147483648
        %v1492 = vor.u32 1.1754944e-38, %v1491
        %v1493 = vsel %vm1490, %v1492, %v1488
        %v1494 = vmul.f32 1.0, %v1493
        %v1495 = vrcp.pop %v1451
        %v1496 = vmul.f32 %v1451, %v1495
        %v1497 = vsub.f32 1.0, %v1496
        %v1498 = vmul.f32 %v1495, %v1497
        %v1499 = vadd.f32 %v1495, %v1498
        %vm1500 = vweird.f32 %v1451
        %vm1501 = vweird.f32 %v1495
        %vm1502 = vmor %vm1500, %vm1501
        %v1503 = vsel %vm1502, %v1495, %v1499
        %v1504 = vand.u32 2147483647, %v1451
        %vm1505 = vcmp.eq.f32.partialorder %v1504, 8.507059e+37
        %v1506 = vand.u32 %v1451, 2147483648
        %v1507 = vor.u32 1.1754944e-38, %v1506
        %v1508 = vsel %vm1505, %v1507, %v1503
        %v1509 = vmul.f32 1.0, %v1508
        %v1510 = vrcp.pop %v1452
        %v1511 = vmul.f32 %v1452, %v1510
        %v1512 = vsub.f32 1.0, %v1511
        %v1513 = vmul.f32 %v1510, %v1512
        %v1514 = vadd.f32 %v1510, %v1513
        %vm1515 = vweird.f32 %v1452
        %vm1516 = vweird.f32 %v1510
        %vm1517 = vmor %vm1515, %vm1516
        %v1518 = vsel %vm1517, %v1510, %v1514
        %v1519 = vand.u32 2147483647, %v1452
        %vm1520 = vcmp.eq.f32.partialorder %v1519, 8.507059e+37
        %v1521 = vand.u32 %v1452, 2147483648
        %v1522 = vor.u32 1.1754944e-38, %v1521
        %v1523 = vsel %vm1520, %v1522, %v1518
        %v1524 = vmul.f32 1.0, %v1523
        %v1525 = vrcp.pop %v1453
        %v1526 = vmul.f32 %v1453, %v1525
        %v1527 = vsub.f32 1.0, %v1526
        %v1528 = vmul.f32 %v1525, %v1527
        %v1529 = vadd.f32 %v1525, %v1528
        %vm1530 = vweird.f32 %v1453
        %vm1531 = vweird.f32 %v1525
        %vm1532 = vmor %vm1530, %vm1531
        %v1533 = vsel %vm1532, %v1525, %v1529
        %v1534 = vand.u32 2147483647, %v1453
        %vm1535 = vcmp.eq.f32.partialorder %v1534, 8.507059e+37
        %v1536 = vand.u32 %v1453, 2147483648
        %v1537 = vor.u32 1.1754944e-38, %v1536
        %v1538 = vsel %vm1535, %v1537, %v1533
        %v1539 = vmul.f32 1.0, %v1538
        %v1540 = vrcp.pop %v1454
        %v1541 = vmul.f32 %v1454, %v1540
        %v1542 = vsub.f32 1.0, %v1541
        %v1543 = vmul.f32 %v1540, %v1542
        %v1544 = vadd.f32 %v1540, %v1543
        %vm1545 = vweird.f32 %v1454
        %vm1546 = vweird.f32 %v1540
        %vm1547 = vmor %vm1545, %vm1546
        %v1548 = vsel %vm1547, %v1540, %v1544
        %v1549 = vand.u32 2147483647, %v1454
        %vm1550 = vcmp.eq.f32.partialorder %v1549, 8.507059e+37
        %v1551 = vand.u32 %v1454, 2147483648
        %v1552 = vor.u32 1.1754944e-38, %v1551
        %v1553 = vsel %vm1550, %v1552, %v1548
        %v1554 = vmul.f32 1.0, %v1553
        %v1555 = vrcp.pop %v1455
        %v1556 = vmul.f32 %v1455, %v1555
        %v1557 = vsub.f32 1.0, %v1556
        %v1558 = vmul.f32 %v1555, %v1557
        %v1559 = vadd.f32 %v1555, %v1558
        %vm1560 = vweird.f32 %v1455
        %vm1561 = vweird.f32 %v1555
        %vm1562 = vmor %vm1560, %vm1561
        %v1563 = vsel %vm1562, %v1555, %v1559
        %v1564 = vand.u32 2147483647, %v1455
        %vm1565 = vcmp.eq.f32.partialorder %v1564, 8.507059e+37
        %v1566 = vand.u32 %v1455, 2147483648
        %v1567 = vor.u32 1.1754944e-38, %v1566
        %v1568 = vsel %vm1565, %v1567, %v1563
        %v1569 = vmul.f32 1.0, %v1568
        %v1570 = vrcp.pop %v1456
        %v1571 = vmul.f32 %v1456, %v1570
        %v1572 = vsub.f32 1.0, %v1571
        %v1573 = vmul.f32 %v1570, %v1572
        %v1574 = vadd.f32 %v1570, %v1573
        %vm1575 = vweird.f32 %v1456
        %vm1576 = vweird.f32 %v1570
        %vm1577 = vmor %vm1575, %vm1576
        %v1578 = vsel %vm1577, %v1570, %v1574
        %v1579 = vand.u32 2147483647, %v1456
        %vm1580 = vcmp.eq.f32.partialorder %v1579, 8.507059e+37
        %v1581 = vand.u32 %v1456, 2147483648
        %v1582 = vor.u32 1.1754944e-38, %v1581
        %v1583 = vsel %vm1580, %v1582, %v1578
        %v1584 = vmul.f32 1.0, %v1583
        %v1585 = vrcp.pop %v1457
        %v1586 = vmul.f32 %v1457, %v1585
        %v1587 = vsub.f32 1.0, %v1586
        %v1588 = vmul.f32 %v1585, %v1587
        %v1589 = vadd.f32 %v1585, %v1588
        %vm1590 = vweird.f32 %v1457
        %vm1591 = vweird.f32 %v1585
        %vm1592 = vmor %vm1590, %vm1591
        %v1593 = vsel %vm1592, %v1585, %v1589
        %v1594 = vand.u32 2147483647, %v1457
        %vm1595 = vcmp.eq.f32.partialorder %v1594, 8.507059e+37
        %v1596 = vand.u32 %v1457, 2147483648
        %v1597 = vor.u32 1.1754944e-38, %v1596
        %v1598 = vsel %vm1595, %v1597, %v1593
        %v1599 = vmul.f32 1.0, %v1598
        %v1600 = vrcp.pop %v1458
        %v1601 = vmul.f32 %v1458, %v1600
        %v1602 = vsub.f32 1.0, %v1601
        %v1603 = vmul.f32 %v1600, %v1602
        %v1604 = vadd.f32 %v1600, %v1603
        %vm1605 = vweird.f32 %v1458
        %vm1606 = vweird.f32 %v1600
        %vm1607 = vmor %vm1605, %vm1606
        %v1608 = vsel %vm1607, %v1600, %v1604
        %v1609 = vand.u32 2147483647, %v1458
        %vm1610 = vcmp.eq.f32.partialorder %v1609, 8.507059e+37
        %v1611 = vand.u32 %v1458, 2147483648
        %v1612 = vor.u32 1.1754944e-38, %v1611
        %v1613 = vsel %vm1610, %v1612, %v1608
        %v1614 = vmul.f32 1.0, %v1613
        %v1615 = vrcp.pop %v1459
        %v1616 = vmul.f32 %v1459, %v1615
        %v1617 = vsub.f32 1.0, %v1616
        %v1618 = vmul.f32 %v1615, %v1617
        %v1619 = vadd.f32 %v1615, %v1618
        %vm1620 = vweird.f32 %v1459
        %vm1621 = vweird.f32 %v1615
        %vm1622 = vmor %vm1620, %vm1621
        %v1623 = vsel %vm1622, %v1615, %v1619
        %v1624 = vand.u32 2147483647, %v1459
        %vm1625 = vcmp.eq.f32.partialorder %v1624, 8.507059e+37
        %v1626 = vand.u32 %v1459, 2147483648
        %v1627 = vor.u32 1.1754944e-38, %v1626
        %v1628 = vsel %vm1625, %v1627, %v1623
        %v1629 = vmul.f32 1.0, %v1628
        %v1630 = vrcp.pop %v1460
        %v1631 = vmul.f32 %v1460, %v1630
        %v1632 = vsub.f32 1.0, %v1631
        %v1633 = vmul.f32 %v1630, %v1632
        %v1634 = vadd.f32 %v1630, %v1633
        %vm1635 = vweird.f32 %v1460
        %vm1636 = vweird.f32 %v1630
        %vm1637 = vmor %vm1635, %vm1636
        %v1638 = vsel %vm1637, %v1630, %v1634
        %v1639 = vand.u32 2147483647, %v1460
        %vm1640 = vcmp.eq.f32.partialorder %v1639, 8.507059e+37
        %v1641 = vand.u32 %v1460, 2147483648
        %v1642 = vor.u32 1.1754944e-38, %v1641
        %v1643 = vsel %vm1640, %v1642, %v1638
        %v1644 = vmul.f32 1.0, %v1643
        %v1645 = vrcp.pop %v1461
        %v1646 = vmul.f32 %v1461, %v1645
        %v1647 = vsub.f32 1.0, %v1646
        %v1648 = vmul.f32 %v1645, %v1647
        %v1649 = vadd.f32 %v1645, %v1648
        %vm1650 = vweird.f32 %v1461
        %vm1651 = vweird.f32 %v1645
        %vm1652 = vmor %vm1650, %vm1651
        %v1653 = vsel %vm1652, %v1645, %v1649
        %v1654 = vand.u32 2147483647, %v1461
        %vm1655 = vcmp.eq.f32.partialorder %v1654, 8.507059e+37
        %v1656 = vand.u32 %v1461, 2147483648
        %v1657 = vor.u32 1.1754944e-38, %v1656
        %v1658 = vsel %vm1655, %v1657, %v1653
        %v1659 = vmul.f32 1.0, %v1658
        %v1660 = vrcp.pop %v1462
        %v1661 = vmul.f32 %v1462, %v1660
        %v1662 = vsub.f32 1.0, %v1661
        %v1663 = vmul.f32 %v1660, %v1662
        %v1664 = vadd.f32 %v1660, %v1663
        %vm1665 = vweird.f32 %v1462
        %vm1666 = vweird.f32 %v1660
        %vm1667 = vmor %vm1665, %vm1666
        %v1668 = vsel %vm1667, %v1660, %v1664
        %v1669 = vand.u32 2147483647, %v1462
        %vm1670 = vcmp.eq.f32.partialorder %v1669, 8.507059e+37
        %v1671 = vand.u32 %v1462, 2147483648
        %v1672 = vor.u32 1.1754944e-38, %v1671
        %v1673 = vsel %vm1670, %v1672, %v1668
        %v1674 = vmul.f32 1.0, %v1673
        %v1675 = vrcp.pop %v1463
        %v1676 = vmul.f32 %v1463, %v1675
        %v1677 = vsub.f32 1.0, %v1676
        %v1678 = vmul.f32 %v1675, %v1677
        %v1679 = vadd.f32 %v1675, %v1678
        %vm1680 = vweird.f32 %v1463
        %vm1681 = vweird.f32 %v1675
        %vm1682 = vmor %vm1680, %vm1681
        %v1683 = vsel %vm1682, %v1675, %v1679
        %v1684 = vand.u32 2147483647, %v1463
        %vm1685 = vcmp.eq.f32.partialorder %v1684, 8.507059e+37
        %v1686 = vand.u32 %v1463, 2147483648
        %v1687 = vor.u32 1.1754944e-38, %v1686
        %v1688 = vsel %vm1685, %v1687, %v1683
        %v1689 = vmul.f32 1.0, %v1688
        %v1690 = vrcp.pop %v1464
        %v1691 = vmul.f32 %v1464, %v1690
        %v1692 = vsub.f32 1.0, %v1691
        %v1693 = vmul.f32 %v1690, %v1692
        %v1694 = vadd.f32 %v1690, %v1693
        %vm1695 = vweird.f32 %v1464
        %vm1696 = vweird.f32 %v1690
        %vm1697 = vmor %vm1695, %vm1696
        %v1698 = vsel %vm1697, %v1690, %v1694
        %v1699 = vand.u32 2147483647, %v1464
        %vm1700 = vcmp.eq.f32.partialorder %v1699, 8.507059e+37
        %v1701 = vand.u32 %v1464, 2147483648
        %v1702 = vor.u32 1.1754944e-38, %v1701
        %v1703 = vsel %vm1700, %v1702, %v1698
        %v1704 = vmul.f32 1.0, %v1703
        %v1705 = vld [vmem:[%s613] sm:$0xf]
        %v1706 = vld [vmem:[%s613 + $0x4] sm:$0xf]
        %v1707 = vld [vmem:[%s613 + $0x8] sm:$0xf]
        %v1708 = vld [vmem:[%s613 + $0xc] sm:$0xf]
        %v1709 = vld [vmem:[%s613 + $0x10] sm:$0xf]
        %v1710 = vld [vmem:[%s613 + $0x14] sm:$0xf]
        %v1711 = vld [vmem:[%s613 + $0x18] sm:$0xf]
        %v1712 = vld [vmem:[%s613 + $0x1c] sm:$0xf]
        %v1713 = vld [vmem:[%s613 + $0x20] sm:$0xf]
        %v1714 = vld [vmem:[%s613 + $0x24] sm:$0xf]
        %v1715 = vld [vmem:[%s613 + $0x28] sm:$0xf]
        %v1716 = vld [vmem:[%s613 + $0x2c] sm:$0xf]
        %v1717 = vld [vmem:[%s613 + $0x30] sm:$0xf]
        %v1718 = vld [vmem:[%s613 + $0x34] sm:$0xf]
        %v1719 = vld [vmem:[%s613 + $0x38] sm:$0xf]
        %v1720 = vld [vmem:[%s613 + $0x3c] sm:$0xf]
        %v1721 = vunpack.c.l.bf16 %v1705
        %v1722 = vunpack.c.l.bf16 %v1706
        %v1723 = vunpack.c.l.bf16 %v1707
        %v1724 = vunpack.c.l.bf16 %v1708
        %v1725 = vunpack.c.l.bf16 %v1709
        %v1726 = vunpack.c.l.bf16 %v1710
        %v1727 = vunpack.c.l.bf16 %v1711
        %v1728 = vunpack.c.l.bf16 %v1712
        %v1729 = vunpack.c.l.bf16 %v1713
        %v1730 = vunpack.c.l.bf16 %v1714
        %v1731 = vunpack.c.l.bf16 %v1715
        %v1732 = vunpack.c.l.bf16 %v1716
        %v1733 = vunpack.c.l.bf16 %v1717
        %v1734 = vunpack.c.l.bf16 %v1718
        %v1735 = vunpack.c.l.bf16 %v1719
        %v1736 = vunpack.c.l.bf16 %v1720
        %v1737 = vld [vmem:[#allocation2] sm:$0xff]
        %v1738 = vld [vmem:[#allocation2 + $0x8] sm:$0xff]
        %v1739 = vld [vmem:[#allocation2 + $0x10] sm:$0xff]
        %v1740 = vld [vmem:[#allocation2 + $0x18] sm:$0xff]
        %v1741 = vld [vmem:[#allocation2 + $0x20] sm:$0xff]
        %v1742 = vld [vmem:[#allocation2 + $0x28] sm:$0xff]
        %v1743 = vld [vmem:[#allocation2 + $0x30] sm:$0xff]
        %v1744 = vld [vmem:[#allocation2 + $0x38] sm:$0xff]
        %v1745 = vld [vmem:[#allocation2 + $0x40] sm:$0xff]
        %v1746 = vld [vmem:[#allocation2 + $0x48] sm:$0xff]
        %v1747 = vld [vmem:[#allocation2 + $0x50] sm:$0xff]
        %v1748 = vld [vmem:[#allocation2 + $0x58] sm:$0xff]
        %v1749 = vld [vmem:[#allocation2 + $0x60] sm:$0xff]
        %v1750 = vld [vmem:[#allocation2 + $0x68] sm:$0xff]
        %v1751 = vld [vmem:[#allocation2 + $0x70] sm:$0xff]
        %v1752 = vld [vmem:[#allocation2 + $0x78] sm:$0xff]
        %1753 = vmatpush.msra.mxu0 %v1752
        %1754 = vmatpush.msra.mxu0 %v1751
        %1755 = vmatpush.msra.mxu0 %v1750
        %1756 = vmatpush.msra.mxu0 %v1749
        %1757 = vmatpush.msra.mxu0 %v1748
        %1758 = vmatpush.msra.mxu0 %v1747
        %1759 = vmatpush.msra.mxu0 %v1746
        %1760 = vmatpush.msra.mxu0 %v1745
        %1761 = vmatpush.msra.mxu0 %v1744
        %1762 = vmatpush.msra.mxu0 %v1743
        %1763 = vmatpush.msra.mxu0 %v1742
        %1764 = vmatpush.msra.mxu0 %v1741
        %1765 = vmatpush.msra.mxu0 %v1740
        %1766 = vmatpush.msra.mxu0 %v1739
        %1767 = vmatpush.msra.mxu0 %v1738
        %1768 = vmatpush.msra.mxu0 %v1737
        %1769 = vmatmul.f32.gmra.mxu0 %v1721
        %v1770 = vpop.f32.mrf.mxu0
        %v1771 = vadd.f32 0.0, %v1770
        %1772 = vmatmul.f32.gmra.mxu0 %v1722
        %v1773 = vpop.f32.mrf.mxu0
        %v1774 = vadd.f32 0.0, %v1773
        %1775 = vmatmul.f32.gmra.mxu0 %v1723
        %v1776 = vpop.f32.mrf.mxu0
        %v1777 = vadd.f32 0.0, %v1776
        %1778 = vmatmul.f32.gmra.mxu0 %v1724
        %v1779 = vpop.f32.mrf.mxu0
        %v1780 = vadd.f32 0.0, %v1779
        %1781 = vmatmul.f32.gmra.mxu0 %v1725
        %v1782 = vpop.f32.mrf.mxu0
        %v1783 = vadd.f32 0.0, %v1782
        %1784 = vmatmul.f32.gmra.mxu0 %v1726
        %v1785 = vpop.f32.mrf.mxu0
        %v1786 = vadd.f32 0.0, %v1785
        %1787 = vmatmul.f32.gmra.mxu0 %v1727
        %v1788 = vpop.f32.mrf.mxu0
        %v1789 = vadd.f32 0.0, %v1788
        %1790 = vmatmul.f32.gmra.mxu0 %v1728
        %v1791 = vpop.f32.mrf.mxu0
        %v1792 = vadd.f32 0.0, %v1791
        %1793 = vmatmul.f32.gmra.mxu0 %v1729
        %v1794 = vpop.f32.mrf.mxu0
        %v1795 = vadd.f32 0.0, %v1794
        %1796 = vmatmul.f32.gmra.mxu0 %v1730
        %v1797 = vpop.f32.mrf.mxu0
        %v1798 = vadd.f32 0.0, %v1797
        %1799 = vmatmul.f32.gmra.mxu0 %v1731
        %v1800 = vpop.f32.mrf.mxu0
        %v1801 = vadd.f32 0.0, %v1800
        %1802 = vmatmul.f32.gmra.mxu0 %v1732
        %v1803 = vpop.f32.mrf.mxu0
        %v1804 = vadd.f32 0.0, %v1803
        %1805 = vmatmul.f32.gmra.mxu0 %v1733
        %v1806 = vpop.f32.mrf.mxu0
        %v1807 = vadd.f32 0.0, %v1806
        %1808 = vmatmul.f32.gmra.mxu0 %v1734
        %v1809 = vpop.f32.mrf.mxu0
        %v1810 = vadd.f32 0.0, %v1809
        %1811 = vmatmul.f32.gmra.mxu0 %v1735
        %v1812 = vpop.f32.mrf.mxu0
        %v1813 = vadd.f32 0.0, %v1812
        %1814 = vmatmul.f32.gmra.mxu0 %v1736
        %v1815 = vpop.f32.mrf.mxu0
        %v1816 = vadd.f32 0.0, %v1815
        %1817 = vdwg.mxu0
        %v1818 = vmul.f32 %v1479, %v1771
        %v1819 = vmul.f32 %v1494, %v1774
        %v1820 = vmul.f32 %v1509, %v1777
        %v1821 = vmul.f32 %v1524, %v1780
        %v1822 = vmul.f32 %v1539, %v1783
        %v1823 = vmul.f32 %v1554, %v1786
        %v1824 = vmul.f32 %v1569, %v1789
        %v1825 = vmul.f32 %v1584, %v1792
        %v1826 = vmul.f32 %v1599, %v1795
        %v1827 = vmul.f32 %v1614, %v1798
        %v1828 = vmul.f32 %v1629, %v1801
        %v1829 = vmul.f32 %v1644, %v1804
        %v1830 = vmul.f32 %v1659, %v1807
        %v1831 = vmul.f32 %v1674, %v1810
        %v1832 = vmul.f32 %v1689, %v1813
        %v1833 = vmul.f32 %v1704, %v1816
        %v1834 = vadd.f32 %v1818, %v1354
        %v1835 = vadd.f32 %v1819, %v1357
        %v1836 = vadd.f32 %v1820, %v1360
        %v1837 = vadd.f32 %v1821, %v1363
        %v1838 = vadd.f32 %v1822, %v1366
        %v1839 = vadd.f32 %v1823, %v1369
        %v1840 = vadd.f32 %v1824, %v1372
        %v1841 = vadd.f32 %v1825, %v1375
        %v1842 = vadd.f32 %v1826, %v1378
        %v1843 = vadd.f32 %v1827, %v1381
        %v1844 = vadd.f32 %v1828, %v1384
        %v1845 = vadd.f32 %v1829, %v1387
        %v1846 = vadd.f32 %v1830, %v1390
        %v1847 = vadd.f32 %v1831, %v1393
        %v1848 = vadd.f32 %v1832, %v1396
        %v1849 = vadd.f32 %v1833, %v1399
        %v1850 = vsub.f32 %v1834, 1.0
        %v1851 = vsub.f32 %v1835, 1.0
        %v1852 = vsub.f32 %v1836, 1.0
        %v1853 = vsub.f32 %v1837, 1.0
        %v1854 = vsub.f32 %v1838, 1.0
        %v1855 = vsub.f32 %v1839, 1.0
        %v1856 = vsub.f32 %v1840, 1.0
        %v1857 = vsub.f32 %v1841, 1.0
        %v1858 = vsub.f32 %v1842, 1.0
        %v1859 = vsub.f32 %v1843, 1.0
        %v1860 = vsub.f32 %v1844, 1.0
        %v1861 = vsub.f32 %v1845, 1.0
        %v1862 = vsub.f32 %v1846, 1.0
        %v1863 = vsub.f32 %v1847, 1.0
        %v1864 = vsub.f32 %v1848, 1.0
        %v1865 = vsub.f32 %v1849, 1.0
        %v1866 = vmul.f32 %v1834, %v1850
        %v1867 = vmul.f32 %v1835, %v1851
        %v1868 = vmul.f32 %v1836, %v1852
        %v1869 = vmul.f32 %v1837, %v1853
        %v1870 = vmul.f32 %v1838, %v1854
        %v1871 = vmul.f32 %v1839, %v1855
        %v1872 = vmul.f32 %v1840, %v1856
        %v1873 = vmul.f32 %v1841, %v1857
        %v1874 = vmul.f32 %v1842, %v1858
        %v1875 = vmul.f32 %v1843, %v1859
        %v1876 = vmul.f32 %v1844, %v1860
        %v1877 = vmul.f32 %v1845, %v1861
        %v1878 = vmul.f32 %v1846, %v1862
        %v1879 = vmul.f32 %v1847, %v1863
        %v1880 = vmul.f32 %v1848, %v1864
        %v1881 = vmul.f32 %v1849, %v1865
        %v1882 = vld [vmem:[#allocation3] sm:$0xff]
        %v1883 = vld [vmem:[#allocation3 + $0x8] sm:$0xff]
        %v1884 = vld [vmem:[#allocation3 + $0x10] sm:$0xff]
        %v1885 = vld [vmem:[#allocation3 + $0x18] sm:$0xff]
        %v1886 = vld [vmem:[#allocation3 + $0x20] sm:$0xff]
        %v1887 = vld [vmem:[#allocation3 + $0x28] sm:$0xff]
        %v1888 = vld [vmem:[#allocation3 + $0x30] sm:$0xff]
        %v1889 = vld [vmem:[#allocation3 + $0x38] sm:$0xff]
        %v1890 = vld [vmem:[%s623] sm:$0xf]
        %v1891 = vld [vmem:[%s623 + $0x4] sm:$0xf]
        %v1892 = vld [vmem:[%s623 + $0x8] sm:$0xf]
        %v1893 = vld [vmem:[%s623 + $0xc] sm:$0xf]
        %v1894 = vld [vmem:[%s623 + $0x10] sm:$0xf]
        %v1895 = vld [vmem:[%s623 + $0x14] sm:$0xf]
        %v1896 = vld [vmem:[%s623 + $0x18] sm:$0xf]
        %v1897 = vld [vmem:[%s623 + $0x1c] sm:$0xf]
        %v1898 = vunpack.c.l.bf16 %v1890
        %v1899 = vunpack.c.l.bf16 %v1891
        %v1900 = vunpack.c.l.bf16 %v1892
        %v1901 = vunpack.c.l.bf16 %v1893
        %v1902 = vunpack.c.l.bf16 %v1894
        %v1903 = vunpack.c.l.bf16 %v1895
        %v1904 = vunpack.c.l.bf16 %v1896
        %v1905 = vunpack.c.l.bf16 %v1897
        %1906 = vmatpush.msra.mxu0 %v1881
        %1907 = vmatpush.msra.mxu0 %v1880
        %1908 = vmatpush.msra.mxu0 %v1879
        %1909 = vmatpush.msra.mxu0 %v1878
        %1910 = vmatpush.msra.mxu0 %v1877
        %1911 = vmatpush.msra.mxu0 %v1876
        %1912 = vmatpush.msra.mxu0 %v1875
        %1913 = vmatpush.msra.mxu0 %v1874
        %1914 = vmatpush.msra.mxu0 %v1873
        %1915 = vmatpush.msra.mxu0 %v1872
        %1916 = vmatpush.msra.mxu0 %v1871
        %1917 = vmatpush.msra.mxu0 %v1870
        %1918 = vmatpush.msra.mxu0 %v1869
        %1919 = vmatpush.msra.mxu0 %v1868
        %1920 = vmatpush.msra.mxu0 %v1867
        %1921 = vmatpush.msra.mxu0 %v1866
        %1922 = vmatmul.f32.gmra.mxu0 %v1898
        %v1923 = vpop.f32.mrf.mxu0
        %v1924 = vadd.f32 0.0, %v1923
        %1925 = vmatmul.f32.gmra.mxu0 %v1899
        %v1926 = vpop.f32.mrf.mxu0
        %v1927 = vadd.f32 0.0, %v1926
        %1928 = vmatmul.f32.gmra.mxu0 %v1900
        %v1929 = vpop.f32.mrf.mxu0
        %v1930 = vadd.f32 0.0, %v1929
        %1931 = vmatmul.f32.gmra.mxu0 %v1901
        %v1932 = vpop.f32.mrf.mxu0
        %v1933 = vadd.f32 0.0, %v1932
        %1934 = vmatmul.f32.gmra.mxu0 %v1902
        %v1935 = vpop.f32.mrf.mxu0
        %v1936 = vadd.f32 0.0, %v1935
        %1937 = vmatmul.f32.gmra.mxu0 %v1903
        %v1938 = vpop.f32.mrf.mxu0
        %v1939 = vadd.f32 0.0, %v1938
        %1940 = vmatmul.f32.gmra.mxu0 %v1904
        %v1941 = vpop.f32.mrf.mxu0
        %v1942 = vadd.f32 0.0, %v1941
        %1943 = vmatmul.f32.gmra.mxu0 %v1905
        %v1944 = vpop.f32.mrf.mxu0
        %v1945 = vadd.f32 0.0, %v1944
        %1946 = vdwg.mxu0
        %v1947 = vadd.f32 %v1882, %v1924
        %v1948 = vadd.f32 %v1883, %v1927
        %v1949 = vadd.f32 %v1884, %v1930
        %v1950 = vadd.f32 %v1885, %v1933
        %v1951 = vadd.f32 %v1886, %v1936
        %v1952 = vadd.f32 %v1887, %v1939
        %v1953 = vadd.f32 %v1888, %v1942
        %v1954 = vadd.f32 %v1889, %v1945
        %1955 = vst [vmem:[#allocation3] sm:$0xff] %v1947
        %1956 = vst [vmem:[#allocation3 + $0x8] sm:$0xff] %v1948
        %1957 = vst [vmem:[#allocation3 + $0x10] sm:$0xff] %v1949
        %1958 = vst [vmem:[#allocation3 + $0x18] sm:$0xff] %v1950
        %1959 = vst [vmem:[#allocation3 + $0x20] sm:$0xff] %v1951
        %1960 = vst [vmem:[#allocation3 + $0x28] sm:$0xff] %v1952
        %1961 = vst [vmem:[#allocation3 + $0x30] sm:$0xff] %v1953
        %1962 = vst [vmem:[#allocation3 + $0x38] sm:$0xff] %v1954
        %p1963 = scmp.eq.s32.totalorder %s43, 3
        // Predicated region
        $region117: #{tpu_custom_call.1} parent=79 // pred_check
          %p1964 = pneg %p1963
        $region118: #{tpu_custom_call.1} parent=79 // pred_check_branch
          %1966 = sbr.rel (%p1964) target = $region120
        $region119: #{tpu_custom_call.1} parent=79 // pred_region
          %v1967 = vld [vmem:[#allocation3] sm:$0xff]
          %v1968 = vld [vmem:[#allocation3 + $0x8] sm:$0xff]
          %v1969 = vld [vmem:[#allocation3 + $0x10] sm:$0xff]
          %v1970 = vld [vmem:[#allocation3 + $0x18] sm:$0xff]
          %v1971 = vld [vmem:[#allocation3 + $0x20] sm:$0xff]
          %v1972 = vld [vmem:[#allocation3 + $0x28] sm:$0xff]
          %v1973 = vld [vmem:[#allocation3 + $0x30] sm:$0xff]
          %v1974 = vld [vmem:[#allocation3 + $0x38] sm:$0xff]
          %v1975 = vld [vmem:[%s718] sm:$0xff]
          %v1976 = vld [vmem:[%s718 + $0x8] sm:$0xff]
          %v1977 = vld [vmem:[%s718 + $0x10] sm:$0xff]
          %v1978 = vld [vmem:[%s718 + $0x18] sm:$0xff]
          %v1979 = vld [vmem:[%s718 + $0x20] sm:$0xff]
          %v1980 = vld [vmem:[%s718 + $0x28] sm:$0xff]
          %v1981 = vld [vmem:[%s718 + $0x30] sm:$0xff]
          %v1982 = vld [vmem:[%s718 + $0x38] sm:$0xff]
          %1984 = vset.pattern.permute.xlu0 0
          %1985 = vperm.xlu0 %1984, %v1975
          %v1986 = vpop.permute.xlu0 %1985
          %1989 = vset.pattern.permute.xlu0 0
          %1990 = vperm.xlu0 %1989, %v1976
          %v1991 = vpop.permute.xlu0 %1990
          %1994 = vset.pattern.permute.xlu0 0
          %1995 = vperm.xlu0 %1994, %v1977
          %v1996 = vpop.permute.xlu0 %1995
          %1999 = vset.pattern.permute.xlu0 0
          %2000 = vperm.xlu0 %1999, %v1978
          %v2001 = vpop.permute.xlu0 %2000
          %2004 = vset.pattern.permute.xlu0 0
          %2005 = vperm.xlu0 %2004, %v1979
          %v2006 = vpop.permute.xlu0 %2005
          %2009 = vset.pattern.permute.xlu0 0
          %2010 = vperm.xlu0 %2009, %v1980
          %v2011 = vpop.permute.xlu0 %2010
          %2014 = vset.pattern.permute.xlu0 0
          %2015 = vperm.xlu0 %2014, %v1981
          %v2016 = vpop.permute.xlu0 %2015
          %2019 = vset.pattern.permute.xlu0 0
          %2020 = vperm.xlu0 %2019, %v1982
          %v2021 = vpop.permute.xlu0 %2020
          %v2023 = vmul.f32 %v1967, %v1986
          %v2024 = vmul.f32 %v1968, %v1991
          %v2025 = vmul.f32 %v1969, %v1996
          %v2026 = vmul.f32 %v1970, %v2001
          %v2027 = vmul.f32 %v1971, %v2006
          %v2028 = vmul.f32 %v1972, %v2011
          %v2029 = vmul.f32 %v1973, %v2016
          %v2030 = vmul.f32 %v1974, %v2021
          %v2031 = vmax.f32 %v2023, 0.0
          %v2032 = vmax.f32 %v2024, 0.0
          %v2033 = vmax.f32 %v2025, 0.0
          %v2034 = vmax.f32 %v2026, 0.0
          %v2035 = vmax.f32 %v2027, 0.0
          %v2036 = vmax.f32 %v2028, 0.0
          %v2037 = vmax.f32 %v2029, 0.0
          %v2038 = vmax.f32 %v2030, 0.0
          %v2039 = vadd.f32 %v2031, 1e-05
          %v2040 = vadd.f32 %v2032, 1e-05
          %v2041 = vadd.f32 %v2033, 1e-05
          %v2042 = vadd.f32 %v2034, 1e-05
          %v2043 = vadd.f32 %v2035, 1e-05
          %v2044 = vadd.f32 %v2036, 1e-05
          %v2045 = vadd.f32 %v2037, 1e-05
          %v2046 = vadd.f32 %v2038, 1e-05
          %v2047 = vrsqrt.pop %v2039
          %v2048 = vmul.f32 %v2047, %v2039
          %v2049 = vmul.f32 %v2048, %v2047
          %v2050 = vmul.f32 0.5, %v2049
          %v2051 = vsub.f32 1.5, %v2050
          %v2052 = vmul.f32 %v2047, %v2051
          %v2053 = vmul.f32 %v2039, %v2052
          %vm2054 = vcmp.eq.f32.partialorder %v2039, inf
          %v2055 = vsel %vm2054, %v2039, %v2053
          %vm2056 = vcmp.eq.f32.partialorder %v2039, 0.0
          %v2057 = vand.u32 %v2039, 2147483648
          %v2058 = vsel %vm2056, %v2057, %v2055
          %v2059 = vrsqrt.pop %v2040
          %v2060 = vmul.f32 %v2059, %v2040
          %v2061 = vmul.f32 %v2060, %v2059
          %v2062 = vmul.f32 0.5, %v2061
          %v2063 = vsub.f32 1.5, %v2062
          %v2064 = vmul.f32 %v2059, %v2063
          %v2065 = vmul.f32 %v2040, %v2064
          %vm2066 = vcmp.eq.f32.partialorder %v2040, inf
          %v2067 = vsel %vm2066, %v2040, %v2065
          %vm2068 = vcmp.eq.f32.partialorder %v2040, 0.0
          %v2069 = vand.u32 %v2040, 2147483648
          %v2070 = vsel %vm2068, %v2069, %v2067
          %v2071 = vrsqrt.pop %v2041
          %v2072 = vmul.f32 %v2071, %v2041
          %v2073 = vmul.f32 %v2072, %v2071
          %v2074 = vmul.f32 0.5, %v2073
          %v2075 = vsub.f32 1.5, %v2074
          %v2076 = vmul.f32 %v2071, %v2075
          %v2077 = vmul.f32 %v2041, %v2076
          %vm2078 = vcmp.eq.f32.partialorder %v2041, inf
          %v2079 = vsel %vm2078, %v2041, %v2077
          %vm2080 = vcmp.eq.f32.partialorder %v2041, 0.0
          %v2081 = vand.u32 %v2041, 2147483648
          %v2082 = vsel %vm2080, %v2081, %v2079
          %v2083 = vrsqrt.pop %v2042
          %v2084 = vmul.f32 %v2083, %v2042
          %v2085 = vmul.f32 %v2084, %v2083
          %v2086 = vmul.f32 0.5, %v2085
          %v2087 = vsub.f32 1.5, %v2086
          %v2088 = vmul.f32 %v2083, %v2087
          %v2089 = vmul.f32 %v2042, %v2088
          %vm2090 = vcmp.eq.f32.partialorder %v2042, inf
          %v2091 = vsel %vm2090, %v2042, %v2089
          %vm2092 = vcmp.eq.f32.partialorder %v2042, 0.0
          %v2093 = vand.u32 %v2042, 2147483648
          %v2094 = vsel %vm2092, %v2093, %v2091
          %v2095 = vrsqrt.pop %v2043
          %v2096 = vmul.f32 %v2095, %v2043
          %v2097 = vmul.f32 %v2096, %v2095
          %v2098 = vmul.f32 0.5, %v2097
          %v2099 = vsub.f32 1.5, %v2098
          %v2100 = vmul.f32 %v2095, %v2099
          %v2101 = vmul.f32 %v2043, %v2100
          %vm2102 = vcmp.eq.f32.partialorder %v2043, inf
          %v2103 = vsel %vm2102, %v2043, %v2101
          %vm2104 = vcmp.eq.f32.partialorder %v2043, 0.0
          %v2105 = vand.u32 %v2043, 2147483648
          %v2106 = vsel %vm2104, %v2105, %v2103
          %v2107 = vrsqrt.pop %v2044
          %v2108 = vmul.f32 %v2107, %v2044
          %v2109 = vmul.f32 %v2108, %v2107
          %v2110 = vmul.f32 0.5, %v2109
          %v2111 = vsub.f32 1.5, %v2110
          %v2112 = vmul.f32 %v2107, %v2111
          %v2113 = vmul.f32 %v2044, %v2112
          %vm2114 = vcmp.eq.f32.partialorder %v2044, inf
          %v2115 = vsel %vm2114, %v2044, %v2113
          %vm2116 = vcmp.eq.f32.partialorder %v2044, 0.0
          %v2117 = vand.u32 %v2044, 2147483648
          %v2118 = vsel %vm2116, %v2117, %v2115
          %v2119 = vrsqrt.pop %v2045
          %v2120 = vmul.f32 %v2119, %v2045
          %v2121 = vmul.f32 %v2120, %v2119
          %v2122 = vmul.f32 0.5, %v2121
          %v2123 = vsub.f32 1.5, %v2122
          %v2124 = vmul.f32 %v2119, %v2123
          %v2125 = vmul.f32 %v2045, %v2124
          %vm2126 = vcmp.eq.f32.partialorder %v2045, inf
          %v2127 = vsel %vm2126, %v2045, %v2125
          %vm2128 = vcmp.eq.f32.partialorder %v2045, 0.0
          %v2129 = vand.u32 %v2045, 2147483648
          %v2130 = vsel %vm2128, %v2129, %v2127
          %v2131 = vrsqrt.pop %v2046
          %v2132 = vmul.f32 %v2131, %v2046
          %v2133 = vmul.f32 %v2132, %v2131
          %v2134 = vmul.f32 0.5, %v2133
          %v2135 = vsub.f32 1.5, %v2134
          %v2136 = vmul.f32 %v2131, %v2135
          %v2137 = vmul.f32 %v2046, %v2136
          %vm2138 = vcmp.eq.f32.partialorder %v2046, inf
          %v2139 = vsel %vm2138, %v2046, %v2137
          %vm2140 = vcmp.eq.f32.partialorder %v2046, 0.0
          %v2141 = vand.u32 %v2046, 2147483648
          %v2142 = vsel %vm2140, %v2141, %v2139
          %2143 = vst [vmem:[%s710] sm:$0xff] %v2058
          %2144 = vst [vmem:[%s710 + $0x8] sm:$0xff] %v2070
          %2145 = vst [vmem:[%s710 + $0x10] sm:$0xff] %v2082
          %2146 = vst [vmem:[%s710 + $0x18] sm:$0xff] %v2094
          %2147 = vst [vmem:[%s710 + $0x20] sm:$0xff] %v2106
          %2148 = vst [vmem:[%s710 + $0x28] sm:$0xff] %v2118
          %2149 = vst [vmem:[%s710 + $0x30] sm:$0xff] %v2130
          %2150 = vst [vmem:[%s710 + $0x38] sm:$0xff] %v2142
        $region120: #{tpu_custom_call.1} parent=79 // pred_fallthru
          _
        %s2151 = sand.u32 %s395, 1
        %s2152 = scalar_lea.sflag [#allocation6], %s2151
        %s2153 = sand.u32 %s395, 1
        %s2154 = smul.addr %s2153, 64
        %s2155 = scalar_lea.vmem [#allocation18], %s2154
        // Predicated region
        $region121: #{tpu_custom_call.1} parent=79 // pred_check
          %p2156 = pneg %p405
        $region122: #{tpu_custom_call.1} parent=79 // pred_check_branch
          %2158 = sbr.rel (%p2156) target = $region124
        $region123: #{tpu_custom_call.1} parent=79 // pred_region
          %s2159 = smul.u32 8, %s42
          %2161 = vsyncadd %s2152, 0
          %s2162 = smul.addr %s2159, 8
          %s2163 = scalar_lea.hbm %s15, %s2162
          %s2164 = sshll.u32 %s2155, 4
          %s2165 = int_to_ptr.vmem [resolvable:$true] %s2164
          %s2166 = sshll.u32 %s2163, 4
          %s2167 = int_to_ptr.hbm [resolvable:$true] %s2166
          %2172 = dma.vmem_to_hbm [thread:$0]  %s2165, 1024, %s2167, %s2152, 128, 128, 8
        $region124: #{tpu_custom_call.1} parent=79 // pred_fallthru
          _
      $region80: #{tpu_custom_call.1} parent=5 // pred_fallthru
        _
      %p2173 = scmp.le.s32.totalorder 2, %s33
      // Predicated region
      $region125: #{tpu_custom_call.1} parent=5 // pred_check
        %p2174 = pneg %p2173
      $region126: #{tpu_custom_call.1} parent=5 // pred_check_branch
        %2176 = sbr.rel (%p2174) target = $region128
      $region127: #{tpu_custom_call.1} parent=5 // pred_region
        %s2177 = ssub.s32 %s33, 2
        // Predicated region
        $region129: #{tpu_custom_call.1} parent=127 // pred_check
          %p2178 = pneg %p411
        $region130: #{tpu_custom_call.1} parent=127 // pred_check_branch
          %2180 = sbr.rel (%p2178) target = $region132
        $region131: #{tpu_custom_call.1} parent=127 // pred_region
          %s2181 = sand.u32 %s396, 1
          %s2182 = scalar_lea.sflag [#allocation6], %s2181
          %s2183 = sand.u32 %s396, 1
          %s2184 = smul.addr %s2183, 64
          %s2185 = scalar_lea.vmem [#allocation18], %s2184
          %2187 = dma.done %s2182, 1024
        $region132: #{tpu_custom_call.1} parent=127 // pred_fallthru
          _
      $region128: #{tpu_custom_call.1} parent=5 // pred_fallthru
        _
    $region6: #{tpu_custom_call.1} parent=1 // loop_footer
      %s37 = sadd.s32 1, %s33
    $region7: #{tpu_custom_call.1} parent=1 // loop_footer_branch
      %32 = sbr.rel target = $region3
    $region8: #{tpu_custom_call.1} parent=1 // loop_exit
      _
    %2188 = vsyncpa [#allocation5], 1
    %s2189 = scalar_lea.sflag [#allocation5], 1
    %2190 = vsyncpa %s2189, 1
    %2191 = vsyncpa [#allocation8], 1
    %s2192 = scalar_lea.sflag [#allocation8], 1
    %2193 = vsyncpa %s2192, 1
    %2194 = vsyncpa [#allocation11], 1
    %2195 = vsyncpa [#allocation14], 1
    %2196 = vsyncpa [#allocation17], 1
    %2197 = vsyncpa [#allocation6], 1
    %s2198 = scalar_lea.sflag [#allocation6], 1
    %2199 = vsyncpa %s2198, 1

</llo_original>
